<compile_context>
chip_gen: v7x
topology: tpu7x:2x2x1
jax: 0.10.0
libtpu: 0.0.40
codegen_flags: <defaults>
</compile_context>

<pallas_src>
from functools import partial

import jax
import jax.numpy as jnp
from jax.experimental import pallas as pl
from jax.experimental.pallas import tpu as pltpu

EPS = 1e-5
KS = 3  # kernel_size=3, padding=1 -> SAME


# ---------------------------------------------------------------------------
# Kernel body
# ---------------------------------------------------------------------------
def _block(act, w1_ref, b1_ref, band_ref, b2_ref, g_ref, be_ref, *,
           mrep, valid_m1, valid_p1, nh, inv_count, cdt):
    """One [1x1 conv -> 3x3 conv -> ReLU -> BatchNorm] block, folded layout.

    act: (N*H, W*Cin) float.  Returns (N*H, W*Cout) float32.
    """
    # ---- 1x1 conv: one matmul against the block-diagonal folded weight ----
    y1 = jnp.dot(act.astype(cdt), w1_ref[...],
                 preferred_element_type=jnp.float32) + b1_ref[...]

    # ---- +/-1 row (H) shifts: XLU sublane rotate + boundary mask ----------
    # Zero rows where h==0 / h==H-1 (also kills wrap-around across images).
    y1_hm1 = jnp.where(valid_m1, pltpu.roll(y1, 1, axis=0), 0.0)       # row h-1
    y1_hp1 = jnp.where(valid_p1, pltpu.roll(y1, nh - 1, axis=0), 0.0)  # row h+1

    # ---- 3x3 conv (padding=1): three accumulating matmuls against the
    #      per-dy W-banded weights (W shifts + W zero padding live in band).
    y2 = (jnp.dot(y1_hm1.astype(cdt), band_ref[0],
                  preferred_element_type=jnp.float32)
          + jnp.dot(y1.astype(cdt), band_ref[1],
                    preferred_element_type=jnp.float32)
          + jnp.dot(y1_hp1.astype(cdt), band_ref[2],
                    preferred_element_type=jnp.float32)
          + b2_ref[...])

    # ---- ReLU ----
    y3 = jnp.maximum(y2, 0.0)

    # ---- BatchNorm2d: training-mode batch stats, single pass --------------
    # Reduce first (sublane sums over NH rows), then the tiny channel-fold
    # matmul which both sums over W lane-groups and re-broadcasts per channel.
    colsum = jnp.sum(y3, axis=0, keepdims=True)          # (1, W*Cout) f32
    colsq = jnp.sum(y3 * y3, axis=0, keepdims=True)      # (1, W*Cout) f32
    mean = jnp.dot(colsum, mrep, preferred_element_type=jnp.float32) * inv_count
    ex2 = jnp.dot(colsq, mrep, preferred_element_type=jnp.float32) * inv_count
    var = jnp.maximum(ex2 - mean * mean, 0.0)            # guard f32 cancellation
    scale = g_ref[...] * jax.lax.rsqrt(var + EPS)
    shift = be_ref[...] - mean * scale
    return y3 * scale + shift


def _make_kernel(num_blocks, N, H, inv_count, cdt):
    nh = N * H

    def kernel(*refs):
        x_ref, mrep_ref = refs[0], refs[1]
        o_ref = refs[-1]

        # Channel-replication matrix (0/1 -> exact in bf16); use f32 inside so
        # BN statistics stay full precision.  Only 1-row operands hit it.
        mrep = mrep_ref[...].astype(jnp.float32)

        # Image-boundary masks for the +/-1 H shifts (h = row % H).
        row = jax.lax.broadcasted_iota(jnp.int32, (nh, 1), 0)
        h = row % H
        valid_m1 = h > 0            # row h-1 exists inside the same image
        valid_p1 = h < (H - 1)      # row h+1 exists inside the same image

        act = x_ref[...]
        for i in range(num_blocks):
            blk = refs[2 + 6 * i: 2 + 6 * (i + 1)]
            act = _block(act, *blk, mrep=mrep, valid_m1=valid_m1,
                         valid_p1=valid_p1, nh=nh, inv_count=inv_count, cdt=cdt)
        o_ref[...] = act

    return kernel


# ---------------------------------------------------------------------------
# Wrapper-side weight folding (plain JAX, tiny, fused under jit)
# ---------------------------------------------------------------------------
def _fold_block_params(p, W, cdt):
    """Fold the (1x1, 3x3) conv weights into lane-dense matmul operands."""
    w1, b1, w2, b2 = p["w1"], p["b1"], p["w2"], p["b2"]
    gamma, beta = p["gamma"], p["beta"]
    cin, cmid = w1.shape
    kh, kw, _, cout = w2.shape

    # Block-diagonal 1x1 weight: (W*Cin, W*Cmid).
    eye_w = jnp.eye(W, dtype=jnp.float32)
    w1_big = jnp.einsum("ab,ic->aibc", eye_w, w1).reshape(W * cin, W * cmid)

    # Per-dy W-banded 3x3 weights: (kh, W*Cmid, W*Cout).
    # band[dy][ws*Cmid+ci, wo*Cout+co] = w2[dy, ws-wo+1, ci, co] when in-band;
    # out-of-range W taps are absent (zero padding in W for free).
    ws = jnp.arange(W)
    wo = jnp.arange(W)
    dx = jnp.arange(kw)
    ind = (ws[None, :, None] ==
           wo[None, None, :] + dx[:, None, None] - (kw // 2)).astype(jnp.float32)
    band = jnp.einsum("dso,kdic->ksioc", ind, w2).reshape(kh, W * cmid, W * cout)

    return (w1_big.astype(cdt),
            jnp.tile(b1, (1, W)).astype(jnp.float32),
            band.astype(cdt),
            jnp.tile(b2, (1, W)).astype(jnp.float32),
            jnp.tile(gamma, (1, W)).astype(jnp.float32),
            jnp.tile(beta, (1, W)).astype(jnp.float32))


def _channel_fold_mat(W, C):
    """mrep[w*C+c, w'*C+c'] = (c == c'): sums/re-broadcasts each channel over W."""
    return jnp.tile(jnp.eye(C, dtype=jnp.float32), (W, W))


@partial(jax.jit, static_argnames=("compute_dtype",))
def separable_downsample_conv(x_nchw, params, *, compute_dtype=jnp.bfloat16):
    """Matches SeparableDownsampleConv.forward; input/output are NCHW float32."""
    N, Cin, H, W = x_nchw.shape
    Cout = params[-1]["w2"].shape[-1]

    # NCHW -> lane-dense folded layout (N*H, W*C).
    x2d = jnp.transpose(x_nchw, (0, 2, 3, 1)).reshape(N * H, W * Cin)
    x2d = x2d.astype(compute_dtype)

    mrep = _channel_fold_mat(W, Cout).astype(compute_dtype)  # 0/1: exact in bf16
    folded = []
    for p in params:
        folded.extend(_fold_block_params(p, W, compute_dtype))
    operands = (x2d, mrep, *folded)

    # Advisory cost estimate so XLA schedules neighbouring ops around the call.
    flops = 0
    for p in params:
        cin, cmid = p["w1"].shape
        co = p["w2"].shape[-1]
        flops += 2 * N * H * (W * cin) * (W * cmid)        # 1x1 conv matmul
        flops += 3 * 2 * N * H * (W * cmid) * (W * co)     # banded 3x3 conv
        flops += 2 * 2 * (W * co) * (W * co)               # BN stat fold
    bytes_accessed = sum(int(a.size) * a.dtype.itemsize for a in operands)
    bytes_accessed += N * H * W * Cout * 4                 # f32 output
    cost = pl.CostEstimate(flops=int(flops),
                           transcendentals=2 * len(params) * W * Cout,
                           bytes_accessed=int(bytes_accessed))

    vmem = pl.BlockSpec(memory_space=pltpu.MemorySpace.VMEM)
    kernel = _make_kernel(len(params), N, H, 1.0 / (N * H * W), compute_dtype)

    # 48 MiB scoped VMEM: plenty for this fully-resident size, under v7x's
    # 64 MiB physical limit and well under 128 MiB on v5e/v6e.
    out2d = pl.pallas_call(
        kernel,
        out_shape=jax.ShapeDtypeStruct((N * H, W * Cout), jnp.float32),
        in_specs=[vmem] * len(operands),
        out_specs=vmem,
        compiler_params=pltpu.CompilerParams(vmem_limit_bytes=48 * 1024 * 1024),
        cost_estimate=cost,
    )(*operands)

    return jnp.transpose(out2d.reshape(N, H, W, Cout), (0, 3, 1, 2))


def init_params(key, n):
    """Deterministic synthetic parameters (shapes from the module __init__)."""
    c = 2 * n
    keys = jax.random.split(key, 12)

    def blk(i, cin):
        return dict(
            w1=jax.random.normal(keys[i + 0], (cin, c), jnp.float32) * 0.2,
            b1=jax.random.normal(keys[i + 1], (1, c), jnp.float32) * 0.1,
            w2=jax.random.normal(keys[i + 2], (KS, KS, c, c), jnp.float32) * 0.1,
            b2=jax.random.normal(keys[i + 3], (1, c), jnp.float32) * 0.1,
            gamma=1.0 + jax.random.normal(keys[i + 4], (1, c), jnp.float32) * 0.1,
            beta=jax.random.normal(keys[i + 5], (1, c), jnp.float32) * 0.1,
        )

    return [blk(0, n), blk(6, c)]


# ---------- pure-JAX reference (for correctness check) ----------
def _ref_block(x, p):
    y1 = jnp.einsum('nhwc,co->nhwo', x, p["w1"]) + p["b1"][0]
    y2 = jax.lax.conv_general_dilated(
        y1, p["w2"], window_strides=(1, 1), padding='SAME',
        dimension_numbers=('NHWC', 'HWIO', 'NHWC')) + p["b2"][0]
    y3 = jnp.maximum(y2, 0.0)
    # NOTE: training-mode batch statistics (PyTorch default after __init__);
    # eval-mode running_mean/running_var are not modeled.
    mean = jnp.mean(y3, axis=(0, 1, 2), keepdims=True)
    var = jnp.mean((y3 - mean) ** 2, axis=(0, 1, 2), keepdims=True)
    return (y3 - mean) * jax.lax.rsqrt(var + EPS) * p["gamma"][0] + p["beta"][0]


def reference(x_nchw, params):
    x = jnp.transpose(x_nchw, (0, 2, 3, 1))
    for p in params:
        x = _ref_block(x, p)
    return jnp.transpose(x, (0, 3, 1, 2))


if __name__ == "__main__":
    key = jax.random.PRNGKey(0)
    kx, kp = jax.random.split(key)

    n = 4                                                     # module arg
    x = jax.random.normal(kx, (2, n, 16, 16), jnp.float32)    # NCHW, like PyTorch
    params = init_params(kp, n)

    ref = reference(x, params)

    # f32 MXU path: tight check against the pure-JAX reference.
    out = separable_downsample_conv(x, params, compute_dtype=jnp.float32)
    out = jax.block_until_ready(out)
    assert out.shape == (2, 2 * n, 16, 16), out.shape
    err = float(jnp.max(jnp.abs(out - ref)))
    assert err < 5e-3, f"f32 max abs err {err}"

    # bf16-operand / f32-accumulate path (default, MXU fast path on all gens).
    # Looser bound: only bf16 operand rounding; correctness gated by f32 check.
    out_bf16 = separable_downsample_conv(x, params, compute_dtype=jnp.bfloat16)
    out_bf16 = jax.block_until_ready(out_bf16)
    err_bf16 = float(jnp.max(jnp.abs(out_bf16 - ref)))
    assert err_bf16 < 2e-1, f"bf16 max abs err {err_bf16}"

    print("KERNEL_OK")
</pallas_src>

<mosaic_0001>
module attributes {stable_mosaic.version = 11 : i64} {
  func.func @kernel(%arg0: memref<32x64xf32, #tpu.memory_space<vmem>>, %arg1: memref<128x128xf32, #tpu.memory_space<vmem>>, %arg2: memref<64x128xf32, #tpu.memory_space<vmem>>, %arg3: memref<1x128xf32, #tpu.memory_space<vmem>>, %arg4: memref<3x128x128xf32, #tpu.memory_space<vmem>>, %arg5: memref<1x128xf32, #tpu.memory_space<vmem>>, %arg6: memref<1x128xf32, #tpu.memory_space<vmem>>, %arg7: memref<1x128xf32, #tpu.memory_space<vmem>>, %arg8: memref<128x128xf32, #tpu.memory_space<vmem>>, %arg9: memref<1x128xf32, #tpu.memory_space<vmem>>, %arg10: memref<3x128x128xf32, #tpu.memory_space<vmem>>, %arg11: memref<1x128xf32, #tpu.memory_space<vmem>>, %arg12: memref<1x128xf32, #tpu.memory_space<vmem>>, %arg13: memref<1x128xf32, #tpu.memory_space<vmem>>, %arg14: memref<32x128xf32, #tpu.memory_space<vmem>>) attributes {dimension_semantics = [], scalar_prefetch = 0 : i64, scratch_operands = 0 : i64, tpu.core_type = #tpu.core_type<tc>} {
    %c0 = arith.constant 0 : index
    %c0_0 = arith.constant 0 : index
    %0 = vector.load %arg1[%c0, %c0_0] : memref<128x128xf32, #tpu.memory_space<vmem>>, vector<128x128xf32>
    %1 = tpu.iota {dimensions = array<i32: 0>} : vector<32x1xi32>
    %c16_i32 = arith.constant 16 : i32
    %c0_i32 = arith.constant 0 : i32
    %2 = arith.cmpi eq, %c16_i32, %c0_i32 : i32
    %c1_i32 = arith.constant 1 : i32
    %3 = arith.select %2, %c1_i32, %c16_i32 : i32
    %4 = vector.broadcast %3 : i32 to vector<32x1xi32>
    %5 = arith.remsi %1, %4 : vector<32x1xi32>
    %c0_i32_1 = arith.constant 0 : i32
    %6 = vector.broadcast %c0_i32_1 : i32 to vector<32x1xi32>
    %7 = arith.cmpi ne, %5, %6 : vector<32x1xi32>
    %c0_i32_2 = arith.constant 0 : i32
    %8 = vector.broadcast %c0_i32_2 : i32 to vector<32x1xi32>
    %9 = arith.cmpi slt, %5, %8 : vector<32x1xi32>
    %c0_i32_3 = arith.constant 0 : i32
    %10 = arith.cmpi slt, %3, %c0_i32_3 : i32
    %11 = vector.broadcast %10 : i1 to vector<32x1xi1>
    %12 = vector.broadcast %11 : vector<32x1xi1> to vector<32x1xi1>
    %13 = arith.xori %9, %12 : vector<32x1xi1>
    %14 = arith.andi %13, %7 : vector<32x1xi1>
    %15 = vector.broadcast %3 : i32 to vector<32x1xi32>
    %16 = arith.addi %5, %15 : vector<32x1xi32>
    %17 = arith.select %14, %16, %5 : vector<32x1xi1>, vector<32x1xi32>
    %c0_i32_4 = arith.constant 0 : i32
    %18 = vector.broadcast %c0_i32_4 : i32 to vector<32x1xi32>
    %19 = arith.cmpi sgt, %17, %18 : vector<32x1xi32>
    %c15_i32 = arith.constant 15 : i32
    %20 = vector.broadcast %c15_i32 : i32 to vector<32x1xi32>
    %21 = arith.cmpi slt, %17, %20 : vector<32x1xi32>
    %c0_5 = arith.constant 0 : index
    %c0_6 = arith.constant 0 : index
    %22 = vector.load %arg0[%c0_5, %c0_6] : memref<32x64xf32, #tpu.memory_space<vmem>>, vector<32x64xf32>
    %c0_7 = arith.constant 0 : index
    %c0_8 = arith.constant 0 : index
    %23 = vector.load %arg2[%c0_7, %c0_8] : memref<64x128xf32, #tpu.memory_space<vmem>>, vector<64x128xf32>
    %cst = arith.constant dense<0.000000e+00> : vector<32x128xf32>
    %24 = tpu.matmul %22, %23, %cst {dimension_numbers = #tpu.dot_dimension_numbers<[1], [0], [0], [1], [0, 0, 1, 1], [], []>} : vector<32x64xf32>, vector<64x128xf32>, vector<32x128xf32> -> vector<32x128xf32>
    %c0_9 = arith.constant 0 : index
    %c0_10 = arith.constant 0 : index
    %25 = vector.load %arg3[%c0_9, %c0_10] : memref<1x128xf32, #tpu.memory_space<vmem>>, vector<1x128xf32>
    %26 = vector.broadcast %25 : vector<1x128xf32> to vector<32x128xf32>
    %27 = arith.addf %24, %26 : vector<32x128xf32>
    %c1_i32_11 = arith.constant 1 : i32
    %28 = tpu.dynamic_rotate %27 by %c1_i32_11 dim 0 : vector<32x128xf32>, i32 -> vector<32x128xf32>
    %cst_12 = arith.constant 0.000000e+00 : f32
    %29 = vector.shape_cast %19 : vector<32x1xi1> to vector<32x1xi1>
    %30 = vector.broadcast %29 : vector<32x1xi1> to vector<32x128xi1>
    %31 = vector.broadcast %cst_12 : f32 to vector<32x128xf32>
    %32 = arith.select %30, %28, %31 : vector<32x128xi1>, vector<32x128xf32>
    %c31_i32 = arith.constant 31 : i32
    %33 = tpu.dynamic_rotate %27 by %c31_i32 dim 0 : vector<32x128xf32>, i32 -> vector<32x128xf32>
    %cst_13 = arith.constant 0.000000e+00 : f32
    %34 = vector.shape_cast %21 : vector<32x1xi1> to vector<32x1xi1>
    %35 = vector.broadcast %34 : vector<32x1xi1> to vector<32x128xi1>
    %36 = vector.broadcast %cst_13 : f32 to vector<32x128xf32>
    %37 = arith.select %35, %33, %36 : vector<32x128xi1>, vector<32x128xf32>
    %c0_14 = arith.constant 0 : index
    %c0_15 = arith.constant 0 : index
    %c0_16 = arith.constant 0 : index
    %38 = vector.load %arg4[%c0_14, %c0_15, %c0_16] : memref<3x128x128xf32, #tpu.memory_space<vmem>>, vector<1x128x128xf32>
    %39 = vector.shape_cast %38 : vector<1x128x128xf32> to vector<128x128xf32>
    %cst_17 = arith.constant dense<0.000000e+00> : vector<32x128xf32>
    %40 = tpu.matmul %32, %39, %cst_17 {dimension_numbers = #tpu.dot_dimension_numbers<[1], [0], [0], [1], [0, 0, 1, 1], [], []>} : vector<32x128xf32>, vector<128x128xf32>, vector<32x128xf32> -> vector<32x128xf32>
    %c1 = arith.constant 1 : index
    %c0_18 = arith.constant 0 : index
    %c0_19 = arith.constant 0 : index
    %41 = vector.load %arg4[%c1, %c0_18, %c0_19] : memref<3x128x128xf32, #tpu.memory_space<vmem>>, vector<1x128x128xf32>
    %42 = vector.shape_cast %41 : vector<1x128x128xf32> to vector<128x128xf32>
    %cst_20 = arith.constant dense<0.000000e+00> : vector<32x128xf32>
    %43 = tpu.matmul %27, %42, %cst_20 {dimension_numbers = #tpu.dot_dimension_numbers<[1], [0], [0], [1], [0, 0, 1, 1], [], []>} : vector<32x128xf32>, vector<128x128xf32>, vector<32x128xf32> -> vector<32x128xf32>
    %44 = arith.addf %40, %43 : vector<32x128xf32>
    %c2 = arith.constant 2 : index
    %c0_21 = arith.constant 0 : index
    %c0_22 = arith.constant 0 : index
    %45 = vector.load %arg4[%c2, %c0_21, %c0_22] : memref<3x128x128xf32, #tpu.memory_space<vmem>>, vector<1x128x128xf32>
    %46 = vector.shape_cast %45 : vector<1x128x128xf32> to vector<128x128xf32>
    %cst_23 = arith.constant dense<0.000000e+00> : vector<32x128xf32>
    %47 = tpu.matmul %37, %46, %cst_23 {dimension_numbers = #tpu.dot_dimension_numbers<[1], [0], [0], [1], [0, 0, 1, 1], [], []>} : vector<32x128xf32>, vector<128x128xf32>, vector<32x128xf32> -> vector<32x128xf32>
    %48 = arith.addf %44, %47 : vector<32x128xf32>
    %c0_24 = arith.constant 0 : index
    %c0_25 = arith.constant 0 : index
    %49 = vector.load %arg5[%c0_24, %c0_25] : memref<1x128xf32, #tpu.memory_space<vmem>>, vector<1x128xf32>
    %50 = vector.broadcast %49 : vector<1x128xf32> to vector<32x128xf32>
    %51 = arith.addf %48, %50 : vector<32x128xf32>
    %cst_26 = arith.constant 0.000000e+00 : f32
    %52 = vector.broadcast %cst_26 : f32 to vector<32x128xf32>
    %53 = arith.maximumf %51, %52 : vector<32x128xf32>
    %cst_27 = arith.constant dense<0.000000e+00> : vector<128xf32>
    %54 = vector.multi_reduction <add>, %53, %cst_27 [0] : vector<32x128xf32> to vector<128xf32>
    %55 = vector.shape_cast %54 : vector<128xf32> to vector<1x128xf32>
    %56 = arith.mulf %53, %53 : vector<32x128xf32>
    %cst_28 = arith.constant dense<0.000000e+00> : vector<128xf32>
    %57 = vector.multi_reduction <add>, %56, %cst_28 [0] : vector<32x128xf32> to vector<128xf32>
    %58 = vector.shape_cast %57 : vector<128xf32> to vector<1x128xf32>
    %cst_29 = arith.constant dense<0.000000e+00> : vector<1x128xf32>
    %59 = tpu.matmul %55, %0, %cst_29 {dimension_numbers = #tpu.dot_dimension_numbers<[1], [0], [0], [1], [0, 0, 1, 1], [], []>} : vector<1x128xf32>, vector<128x128xf32>, vector<1x128xf32> -> vector<1x128xf32>
    %cst_30 = arith.constant 0.001953125 : f32
    %60 = vector.broadcast %cst_30 : f32 to vector<1x128xf32>
    %61 = arith.mulf %59, %60 : vector<1x128xf32>
    %cst_31 = arith.constant dense<0.000000e+00> : vector<1x128xf32>
    %62 = tpu.matmul %58, %0, %cst_31 {dimension_numbers = #tpu.dot_dimension_numbers<[1], [0], [0], [1], [0, 0, 1, 1], [], []>} : vector<1x128xf32>, vector<128x128xf32>, vector<1x128xf32> -> vector<1x128xf32>
    %cst_32 = arith.constant 0.001953125 : f32
    %63 = vector.broadcast %cst_32 : f32 to vector<1x128xf32>
    %64 = arith.mulf %62, %63 : vector<1x128xf32>
    %65 = arith.mulf %61, %61 : vector<1x128xf32>
    %66 = arith.subf %64, %65 : vector<1x128xf32>
    %cst_33 = arith.constant 0.000000e+00 : f32
    %67 = vector.broadcast %cst_33 : f32 to vector<1x128xf32>
    %68 = arith.maximumf %66, %67 : vector<1x128xf32>
    %c0_34 = arith.constant 0 : index
    %c0_35 = arith.constant 0 : index
    %69 = vector.load %arg6[%c0_34, %c0_35] : memref<1x128xf32, #tpu.memory_space<vmem>>, vector<1x128xf32>
    %cst_36 = arith.constant 9.99999974E-6 : f32
    %70 = vector.broadcast %cst_36 : f32 to vector<1x128xf32>
    %71 = arith.addf %68, %70 : vector<1x128xf32>
    %72 = math.rsqrt %71 : vector<1x128xf32>
    %73 = arith.mulf %69, %72 : vector<1x128xf32>
    %c0_37 = arith.constant 0 : index
    %c0_38 = arith.constant 0 : index
    %74 = vector.load %arg7[%c0_37, %c0_38] : memref<1x128xf32, #tpu.memory_space<vmem>>, vector<1x128xf32>
    %75 = arith.mulf %61, %73 : vector<1x128xf32>
    %76 = arith.subf %74, %75 : vector<1x128xf32>
    %77 = vector.broadcast %73 : vector<1x128xf32> to vector<32x128xf32>
    %78 = arith.mulf %53, %77 : vector<32x128xf32>
    %79 = vector.broadcast %76 : vector<1x128xf32> to vector<32x128xf32>
    %80 = arith.addf %78, %79 : vector<32x128xf32>
    %c0_39 = arith.constant 0 : index
    %c0_40 = arith.constant 0 : index
    %81 = vector.load %arg8[%c0_39, %c0_40] : memref<128x128xf32, #tpu.memory_space<vmem>>, vector<128x128xf32>
    %cst_41 = arith.constant dense<0.000000e+00> : vector<32x128xf32>
    %82 = tpu.matmul %80, %81, %cst_41 {dimension_numbers = #tpu.dot_dimension_numbers<[1], [0], [0], [1], [0, 0, 1, 1], [], []>} : vector<32x128xf32>, vector<128x128xf32>, vector<32x128xf32> -> vector<32x128xf32>
    %c0_42 = arith.constant 0 : index
    %c0_43 = arith.constant 0 : index
    %83 = vector.load %arg9[%c0_42, %c0_43] : memref<1x128xf32, #tpu.memory_space<vmem>>, vector<1x128xf32>
    %84 = vector.broadcast %83 : vector<1x128xf32> to vector<32x128xf32>
    %85 = arith.addf %82, %84 : vector<32x128xf32>
    %c1_i32_44 = arith.constant 1 : i32
    %86 = tpu.dynamic_rotate %85 by %c1_i32_44 dim 0 : vector<32x128xf32>, i32 -> vector<32x128xf32>
    %cst_45 = arith.constant 0.000000e+00 : f32
    %87 = vector.shape_cast %19 : vector<32x1xi1> to vector<32x1xi1>
    %88 = vector.broadcast %87 : vector<32x1xi1> to vector<32x128xi1>
    %89 = vector.broadcast %cst_45 : f32 to vector<32x128xf32>
    %90 = arith.select %88, %86, %89 : vector<32x128xi1>, vector<32x128xf32>
    %c31_i32_46 = arith.constant 31 : i32
    %91 = tpu.dynamic_rotate %85 by %c31_i32_46 dim 0 : vector<32x128xf32>, i32 -> vector<32x128xf32>
    %cst_47 = arith.constant 0.000000e+00 : f32
    %92 = vector.shape_cast %21 : vector<32x1xi1> to vector<32x1xi1>
    %93 = vector.broadcast %92 : vector<32x1xi1> to vector<32x128xi1>
    %94 = vector.broadcast %cst_47 : f32 to vector<32x128xf32>
    %95 = arith.select %93, %91, %94 : vector<32x128xi1>, vector<32x128xf32>
    %c0_48 = arith.constant 0 : index
    %c0_49 = arith.constant 0 : index
    %c0_50 = arith.constant 0 : index
    %96 = vector.load %arg10[%c0_48, %c0_49, %c0_50] : memref<3x128x128xf32, #tpu.memory_space<vmem>>, vector<1x128x128xf32>
    %97 = vector.shape_cast %96 : vector<1x128x128xf32> to vector<128x128xf32>
    %cst_51 = arith.constant dense<0.000000e+00> : vector<32x128xf32>
    %98 = tpu.matmul %90, %97, %cst_51 {dimension_numbers = #tpu.dot_dimension_numbers<[1], [0], [0], [1], [0, 0, 1, 1], [], []>} : vector<32x128xf32>, vector<128x128xf32>, vector<32x128xf32> -> vector<32x128xf32>
    %c1_52 = arith.constant 1 : index
    %c0_53 = arith.constant 0 : index
    %c0_54 = arith.constant 0 : index
    %99 = vector.load %arg10[%c1_52, %c0_53, %c0_54] : memref<3x128x128xf32, #tpu.memory_space<vmem>>, vector<1x128x128xf32>
    %100 = vector.shape_cast %99 : vector<1x128x128xf32> to vector<128x128xf32>
    %cst_55 = arith.constant dense<0.000000e+00> : vector<32x128xf32>
    %101 = tpu.matmul %85, %100, %cst_55 {dimension_numbers = #tpu.dot_dimension_numbers<[1], [0], [0], [1], [0, 0, 1, 1], [], []>} : vector<32x128xf32>, vector<128x128xf32>, vector<32x128xf32> -> vector<32x128xf32>
    %102 = arith.addf %98, %101 : vector<32x128xf32>
    %c2_56 = arith.constant 2 : index
    %c0_57 = arith.constant 0 : index
    %c0_58 = arith.constant 0 : index
    %103 = vector.load %arg10[%c2_56, %c0_57, %c0_58] : memref<3x128x128xf32, #tpu.memory_space<vmem>>, vector<1x128x128xf32>
    %104 = vector.shape_cast %103 : vector<1x128x128xf32> to vector<128x128xf32>
    %cst_59 = arith.constant dense<0.000000e+00> : vector<32x128xf32>
    %105 = tpu.matmul %95, %104, %cst_59 {dimension_numbers = #tpu.dot_dimension_numbers<[1], [0], [0], [1], [0, 0, 1, 1], [], []>} : vector<32x128xf32>, vector<128x128xf32>, vector<32x128xf32> -> vector<32x128xf32>
    %106 = arith.addf %102, %105 : vector<32x128xf32>
    %c0_60 = arith.constant 0 : index
    %c0_61 = arith.constant 0 : index
    %107 = vector.load %arg11[%c0_60, %c0_61] : memref<1x128xf32, #tpu.memory_space<vmem>>, vector<1x128xf32>
    %108 = vector.broadcast %107 : vector<1x128xf32> to vector<32x128xf32>
    %109 = arith.addf %106, %108 : vector<32x128xf32>
    %cst_62 = arith.constant 0.000000e+00 : f32
    %110 = vector.broadcast %cst_62 : f32 to vector<32x128xf32>
    %111 = arith.maximumf %109, %110 : vector<32x128xf32>
    %cst_63 = arith.constant dense<0.000000e+00> : vector<128xf32>
    %112 = vector.multi_reduction <add>, %111, %cst_63 [0] : vector<32x128xf32> to vector<128xf32>
    %113 = vector.shape_cast %112 : vector<128xf32> to vector<1x128xf32>
    %114 = arith.mulf %111, %111 : vector<32x128xf32>
    %cst_64 = arith.constant dense<0.000000e+00> : vector<128xf32>
    %115 = vector.multi_reduction <add>, %114, %cst_64 [0] : vector<32x128xf32> to vector<128xf32>
    %116 = vector.shape_cast %115 : vector<128xf32> to vector<1x128xf32>
    %cst_65 = arith.constant dense<0.000000e+00> : vector<1x128xf32>
    %117 = tpu.matmul %113, %0, %cst_65 {dimension_numbers = #tpu.dot_dimension_numbers<[1], [0], [0], [1], [0, 0, 1, 1], [], []>} : vector<1x128xf32>, vector<128x128xf32>, vector<1x128xf32> -> vector<1x128xf32>
    %cst_66 = arith.constant 0.001953125 : f32
    %118 = vector.broadcast %cst_66 : f32 to vector<1x128xf32>
    %119 = arith.mulf %117, %118 : vector<1x128xf32>
    %cst_67 = arith.constant dense<0.000000e+00> : vector<1x128xf32>
    %120 = tpu.matmul %116, %0, %cst_67 {dimension_numbers = #tpu.dot_dimension_numbers<[1], [0], [0], [1], [0, 0, 1, 1], [], []>} : vector<1x128xf32>, vector<128x128xf32>, vector<1x128xf32> -> vector<1x128xf32>
    %cst_68 = arith.constant 0.001953125 : f32
    %121 = vector.broadcast %cst_68 : f32 to vector<1x128xf32>
    %122 = arith.mulf %120, %121 : vector<1x128xf32>
    %123 = arith.mulf %119, %119 : vector<1x128xf32>
    %124 = arith.subf %122, %123 : vector<1x128xf32>
    %cst_69 = arith.constant 0.000000e+00 : f32
    %125 = vector.broadcast %cst_69 : f32 to vector<1x128xf32>
    %126 = arith.maximumf %124, %125 : vector<1x128xf32>
    %c0_70 = arith.constant 0 : index
    %c0_71 = arith.constant 0 : index
    %127 = vector.load %arg12[%c0_70, %c0_71] : memref<1x128xf32, #tpu.memory_space<vmem>>, vector<1x128xf32>
    %cst_72 = arith.constant 9.99999974E-6 : f32
    %128 = vector.broadcast %cst_72 : f32 to vector<1x128xf32>
    %129 = arith.addf %126, %128 : vector<1x128xf32>
    %130 = math.rsqrt %129 : vector<1x128xf32>
    %131 = arith.mulf %127, %130 : vector<1x128xf32>
    %c0_73 = arith.constant 0 : index
    %c0_74 = arith.constant 0 : index
    %132 = vector.load %arg13[%c0_73, %c0_74] : memref<1x128xf32, #tpu.memory_space<vmem>>, vector<1x128xf32>
    %133 = arith.mulf %119, %131 : vector<1x128xf32>
    %134 = arith.subf %132, %133 : vector<1x128xf32>
    %135 = vector.broadcast %131 : vector<1x128xf32> to vector<32x128xf32>
    %136 = arith.mulf %111, %135 : vector<32x128xf32>
    %137 = vector.broadcast %134 : vector<1x128xf32> to vector<32x128xf32>
    %138 = arith.addf %136, %137 : vector<32x128xf32>
    %c0_75 = arith.constant 0 : index
    %c0_76 = arith.constant 0 : index
    %139 = vector.load %arg14[%c0_75, %c0_76] : memref<32x128xf32, #tpu.memory_space<vmem>>, vector<32x128xf32>
    tpu.vector_store %arg14[%c0_75, %c0_76], %138 {strides = array<i32>} : memref<32x128xf32, #tpu.memory_space<vmem>>, vector<32x128xf32>,
    return
  }
}

</mosaic_0001>

<llo_original>
// kernel: tile.48
$region0: #{tile.48}
  #allocation0 [shape = 's32[1]{0}', space=sflag, size = 0x4, scoped, tag = 'scoped memory for tile.48']
  %s0 = inlined_call_operand.vmem [shape: f32[8,8], index: 0, kind: input, shape index: {}]
  %s1 = inlined_call_operand.vmem [shape: f32[16,8,16,8], index: 1, kind: output, shape index: {}]
  // Predicated region
  $region2: #{tile.48} parent=0 // pred_check
    _
  $region3: #{tile.48} parent=0 // pred_check_branch
    %3 = sbr.rel (0) target = $region5
  $region4: #{tile.48} parent=0 // pred_region
    _
  $region5: #{tile.48} parent=0 // pred_fallthru
    _
  %v4 = vld [vmem:[%s0] ss:$0 sm:$0xff]
  %5 = vst [vmem:[%s1] sm:$0xff] %v4
  %s6 = scalar_lea.vmem %s1, 128
  %7 = vst [vmem:[%s6] sm:$0xff] %v4
  %s8 = scalar_lea.vmem %s1, 256
  %9 = vst [vmem:[%s8] sm:$0xff] %v4
  %s10 = scalar_lea.vmem %s1, 384
  %11 = vst [vmem:[%s10] sm:$0xff] %v4
  %s12 = scalar_lea.vmem %s1, 512
  %13 = vst [vmem:[%s12] sm:$0xff] %v4
  %s14 = scalar_lea.vmem %s1, 640
  %15 = vst [vmem:[%s14] sm:$0xff] %v4
  %s16 = scalar_lea.vmem %s1, 768
  %17 = vst [vmem:[%s16] sm:$0xff] %v4
  %s18 = scalar_lea.vmem %s1, 896
  %19 = vst [vmem:[%s18] sm:$0xff] %v4
  %s20 = scalar_lea.vmem %s1, 1024
  %21 = vst [vmem:[%s20] sm:$0xff] %v4
  %s22 = scalar_lea.vmem %s1, 1152
  %23 = vst [vmem:[%s22] sm:$0xff] %v4
  %s24 = scalar_lea.vmem %s1, 1280
  %25 = vst [vmem:[%s24] sm:$0xff] %v4
  %s26 = scalar_lea.vmem %s1, 1408
  %27 = vst [vmem:[%s26] sm:$0xff] %v4
  %s28 = scalar_lea.vmem %s1, 1536
  %29 = vst [vmem:[%s28] sm:$0xff] %v4
  %s30 = scalar_lea.vmem %s1, 1664
  %31 = vst [vmem:[%s30] sm:$0xff] %v4
  %s32 = scalar_lea.vmem %s1, 1792
  %33 = vst [vmem:[%s32] sm:$0xff] %v4
  %s34 = scalar_lea.vmem %s1, 1920
  %35 = vst [vmem:[%s34] sm:$0xff] %v4
  %s36 = scalar_lea.vmem %s0, 1
  %v37 = vld [vmem:[%s36] ss:$0 sm:$0xff]
  %s38 = scalar_lea.vmem %s1, 16
  %39 = vst [vmem:[%s38] sm:$0xff] %v37
  %s40 = scalar_lea.vmem %s1, 144
  %41 = vst [vmem:[%s40] sm:$0xff] %v37
  %s42 = scalar_lea.vmem %s1, 272
  %43 = vst [vmem:[%s42] sm:$0xff] %v37
  %s44 = scalar_lea.vmem %s1, 400
  %45 = vst [vmem:[%s44] sm:$0xff] %v37
  %s46 = scalar_lea.vmem %s1, 528
  %47 = vst [vmem:[%s46] sm:$0xff] %v37
  %s48 = scalar_lea.vmem %s1, 656
  %49 = vst [vmem:[%s48] sm:$0xff] %v37
  %s50 = scalar_lea.vmem %s1, 784
  %51 = vst [vmem:[%s50] sm:$0xff] %v37
  %s52 = scalar_lea.vmem %s1, 912
  %53 = vst [vmem:[%s52] sm:$0xff] %v37
  %s54 = scalar_lea.vmem %s1, 1040
  %55 = vst [vmem:[%s54] sm:$0xff] %v37
  %s56 = scalar_lea.vmem %s1, 1168
  %57 = vst [vmem:[%s56] sm:$0xff] %v37
  %s58 = scalar_lea.vmem %s1, 1296
  %59 = vst [vmem:[%s58] sm:$0xff] %v37
  %s60 = scalar_lea.vmem %s1, 1424
  %61 = vst [vmem:[%s60] sm:$0xff] %v37
  %s62 = scalar_lea.vmem %s1, 1552
  %63 = vst [vmem:[%s62] sm:$0xff] %v37
  %s64 = scalar_lea.vmem %s1, 1680
  %65 = vst [vmem:[%s64] sm:$0xff] %v37
  %s66 = scalar_lea.vmem %s1, 1808
  %67 = vst [vmem:[%s66] sm:$0xff] %v37
  %s68 = scalar_lea.vmem %s1, 1936
  %69 = vst [vmem:[%s68] sm:$0xff] %v37
  %s70 = scalar_lea.vmem %s0, 2
  %v71 = vld [vmem:[%s70] ss:$0 sm:$0xff]
  %s72 = scalar_lea.vmem %s1, 32
  %73 = vst [vmem:[%s72] sm:$0xff] %v71
  %s74 = scalar_lea.vmem %s1, 160
  %75 = vst [vmem:[%s74] sm:$0xff] %v71
  %s76 = scalar_lea.vmem %s1, 288
  %77 = vst [vmem:[%s76] sm:$0xff] %v71
  %s78 = scalar_lea.vmem %s1, 416
  %79 = vst [vmem:[%s78] sm:$0xff] %v71
  %s80 = scalar_lea.vmem %s1, 544
  %81 = vst [vmem:[%s80] sm:$0xff] %v71
  %s82 = scalar_lea.vmem %s1, 672
  %83 = vst [vmem:[%s82] sm:$0xff] %v71
  %s84 = scalar_lea.vmem %s1, 800
  %85 = vst [vmem:[%s84] sm:$0xff] %v71
  %s86 = scalar_lea.vmem %s1, 928
  %87 = vst [vmem:[%s86] sm:$0xff] %v71
  %s88 = scalar_lea.vmem %s1, 1056
  %89 = vst [vmem:[%s88] sm:$0xff] %v71
  %s90 = scalar_lea.vmem %s1, 1184
  %91 = vst [vmem:[%s90] sm:$0xff] %v71
  %s92 = scalar_lea.vmem %s1, 1312
  %93 = vst [vmem:[%s92] sm:$0xff] %v71
  %s94 = scalar_lea.vmem %s1, 1440
  %95 = vst [vmem:[%s94] sm:$0xff] %v71
  %s96 = scalar_lea.vmem %s1, 1568
  %97 = vst [vmem:[%s96] sm:$0xff] %v71
  %s98 = scalar_lea.vmem %s1, 1696
  %99 = vst [vmem:[%s98] sm:$0xff] %v71
  %s100 = scalar_lea.vmem %s1, 1824
  %101 = vst [vmem:[%s100] sm:$0xff] %v71
  %s102 = scalar_lea.vmem %s1, 1952
  %103 = vst [vmem:[%s102] sm:$0xff] %v71
  %s104 = scalar_lea.vmem %s0, 3
  %v105 = vld [vmem:[%s104] ss:$0 sm:$0xff]
  %s106 = scalar_lea.vmem %s1, 48
  %107 = vst [vmem:[%s106] sm:$0xff] %v105
  %s108 = scalar_lea.vmem %s1, 176
  %109 = vst [vmem:[%s108] sm:$0xff] %v105
  %s110 = scalar_lea.vmem %s1, 304
  %111 = vst [vmem:[%s110] sm:$0xff] %v105
  %s112 = scalar_lea.vmem %s1, 432
  %113 = vst [vmem:[%s112] sm:$0xff] %v105
  %s114 = scalar_lea.vmem %s1, 560
  %115 = vst [vmem:[%s114] sm:$0xff] %v105
  %s116 = scalar_lea.vmem %s1, 688
  %117 = vst [vmem:[%s116] sm:$0xff] %v105
  %s118 = scalar_lea.vmem %s1, 816
  %119 = vst [vmem:[%s118] sm:$0xff] %v105
  %s120 = scalar_lea.vmem %s1, 944
  %121 = vst [vmem:[%s120] sm:$0xff] %v105
  %s122 = scalar_lea.vmem %s1, 1072
  %123 = vst [vmem:[%s122] sm:$0xff] %v105
  %s124 = scalar_lea.vmem %s1, 1200
  %125 = vst [vmem:[%s124] sm:$0xff] %v105
  %s126 = scalar_lea.vmem %s1, 1328
  %127 = vst [vmem:[%s126] sm:$0xff] %v105
  %s128 = scalar_lea.vmem %s1, 1456
  %129 = vst [vmem:[%s128] sm:$0xff] %v105
  %s130 = scalar_lea.vmem %s1, 1584
  %131 = vst [vmem:[%s130] sm:$0xff] %v105
  %s132 = scalar_lea.vmem %s1, 1712
  %133 = vst [vmem:[%s132] sm:$0xff] %v105
  %s134 = scalar_lea.vmem %s1, 1840
  %135 = vst [vmem:[%s134] sm:$0xff] %v105
  %s136 = scalar_lea.vmem %s1, 1968
  %137 = vst [vmem:[%s136] sm:$0xff] %v105
  %s138 = scalar_lea.vmem %s0, 4
  %v139 = vld [vmem:[%s138] ss:$0 sm:$0xff]
  %s140 = scalar_lea.vmem %s1, 64
  %141 = vst [vmem:[%s140] sm:$0xff] %v139
  %s142 = scalar_lea.vmem %s1, 192
  %143 = vst [vmem:[%s142] sm:$0xff] %v139
  %s144 = scalar_lea.vmem %s1, 320
  %145 = vst [vmem:[%s144] sm:$0xff] %v139
  %s146 = scalar_lea.vmem %s1, 448
  %147 = vst [vmem:[%s146] sm:$0xff] %v139
  %s148 = scalar_lea.vmem %s1, 576
  %149 = vst [vmem:[%s148] sm:$0xff] %v139
  %s150 = scalar_lea.vmem %s1, 704
  %151 = vst [vmem:[%s150] sm:$0xff] %v139
  %s152 = scalar_lea.vmem %s1, 832
  %153 = vst [vmem:[%s152] sm:$0xff] %v139
  %s154 = scalar_lea.vmem %s1, 960
  %155 = vst [vmem:[%s154] sm:$0xff] %v139
  %s156 = scalar_lea.vmem %s1, 1088
  %157 = vst [vmem:[%s156] sm:$0xff] %v139
  %s158 = scalar_lea.vmem %s1, 1216
  %159 = vst [vmem:[%s158] sm:$0xff] %v139
  %s160 = scalar_lea.vmem %s1, 1344
  %161 = vst [vmem:[%s160] sm:$0xff] %v139
  %s162 = scalar_lea.vmem %s1, 1472
  %163 = vst [vmem:[%s162] sm:$0xff] %v139
  %s164 = scalar_lea.vmem %s1, 1600
  %165 = vst [vmem:[%s164] sm:$0xff] %v139
  %s166 = scalar_lea.vmem %s1, 1728
  %167 = vst [vmem:[%s166] sm:$0xff] %v139
  %s168 = scalar_lea.vmem %s1, 1856
  %169 = vst [vmem:[%s168] sm:$0xff] %v139
  %s170 = scalar_lea.vmem %s1, 1984
  %171 = vst [vmem:[%s170] sm:$0xff] %v139
  %s172 = scalar_lea.vmem %s0, 5
  %v173 = vld [vmem:[%s172] ss:$0 sm:$0xff]
  %s174 = scalar_lea.vmem %s1, 80
  %175 = vst [vmem:[%s174] sm:$0xff] %v173
  %s176 = scalar_lea.vmem %s1, 208
  %177 = vst [vmem:[%s176] sm:$0xff] %v173
  %s178 = scalar_lea.vmem %s1, 336
  %179 = vst [vmem:[%s178] sm:$0xff] %v173
  %s180 = scalar_lea.vmem %s1, 464
  %181 = vst [vmem:[%s180] sm:$0xff] %v173
  %s182 = scalar_lea.vmem %s1, 592
  %183 = vst [vmem:[%s182] sm:$0xff] %v173
  %s184 = scalar_lea.vmem %s1, 720
  %185 = vst [vmem:[%s184] sm:$0xff] %v173
  %s186 = scalar_lea.vmem %s1, 848
  %187 = vst [vmem:[%s186] sm:$0xff] %v173
  %s188 = scalar_lea.vmem %s1, 976
  %189 = vst [vmem:[%s188] sm:$0xff] %v173
  %s190 = scalar_lea.vmem %s1, 1104
  %191 = vst [vmem:[%s190] sm:$0xff] %v173
  %s192 = scalar_lea.vmem %s1, 1232
  %193 = vst [vmem:[%s192] sm:$0xff] %v173
  %s194 = scalar_lea.vmem %s1, 1360
  %195 = vst [vmem:[%s194] sm:$0xff] %v173
  %s196 = scalar_lea.vmem %s1, 1488
  %197 = vst [vmem:[%s196] sm:$0xff] %v173
  %s198 = scalar_lea.vmem %s1, 1616
  %199 = vst [vmem:[%s198] sm:$0xff] %v173
  %s200 = scalar_lea.vmem %s1, 1744
  %201 = vst [vmem:[%s200] sm:$0xff] %v173
  %s202 = scalar_lea.vmem %s1, 1872
  %203 = vst [vmem:[%s202] sm:$0xff] %v173
  %s204 = scalar_lea.vmem %s1, 2000
  %205 = vst [vmem:[%s204] sm:$0xff] %v173
  %s206 = scalar_lea.vmem %s0, 6
  %v207 = vld [vmem:[%s206] ss:$0 sm:$0xff]
  %s208 = scalar_lea.vmem %s1, 96
  %209 = vst [vmem:[%s208] sm:$0xff] %v207
  %s210 = scalar_lea.vmem %s1, 224
  %211 = vst [vmem:[%s210] sm:$0xff] %v207
  %s212 = scalar_lea.vmem %s1, 352
  %213 = vst [vmem:[%s212] sm:$0xff] %v207
  %s214 = scalar_lea.vmem %s1, 480
  %215 = vst [vmem:[%s214] sm:$0xff] %v207
  %s216 = scalar_lea.vmem %s1, 608
  %217 = vst [vmem:[%s216] sm:$0xff] %v207
  %s218 = scalar_lea.vmem %s1, 736
  %219 = vst [vmem:[%s218] sm:$0xff] %v207
  %s220 = scalar_lea.vmem %s1, 864
  %221 = vst [vmem:[%s220] sm:$0xff] %v207
  %s222 = scalar_lea.vmem %s1, 992
  %223 = vst [vmem:[%s222] sm:$0xff] %v207
  %s224 = scalar_lea.vmem %s1, 1120
  %225 = vst [vmem:[%s224] sm:$0xff] %v207
  %s226 = scalar_lea.vmem %s1, 1248
  %227 = vst [vmem:[%s226] sm:$0xff] %v207
  %s228 = scalar_lea.vmem %s1, 1376
  %229 = vst [vmem:[%s228] sm:$0xff] %v207
  %s230 = scalar_lea.vmem %s1, 1504
  %231 = vst [vmem:[%s230] sm:$0xff] %v207
  %s232 = scalar_lea.vmem %s1, 1632
  %233 = vst [vmem:[%s232] sm:$0xff] %v207
  %s234 = scalar_lea.vmem %s1, 1760
  %235 = vst [vmem:[%s234] sm:$0xff] %v207
  %s236 = scalar_lea.vmem %s1, 1888
  %237 = vst [vmem:[%s236] sm:$0xff] %v207
  %s238 = scalar_lea.vmem %s1, 2016
  %239 = vst [vmem:[%s238] sm:$0xff] %v207
  %s240 = scalar_lea.vmem %s0, 7
  %v241 = vld [vmem:[%s240] ss:$0 sm:$0xff]
  %s242 = scalar_lea.vmem %s1, 112
  %243 = vst [vmem:[%s242] sm:$0xff] %v241
  %s244 = scalar_lea.vmem %s1, 240
  %245 = vst [vmem:[%s244] sm:$0xff] %v241
  %s246 = scalar_lea.vmem %s1, 368
  %247 = vst [vmem:[%s246] sm:$0xff] %v241
  %s248 = scalar_lea.vmem %s1, 496
  %249 = vst [vmem:[%s248] sm:$0xff] %v241
  %s250 = scalar_lea.vmem %s1, 624
  %251 = vst [vmem:[%s250] sm:$0xff] %v241
  %s252 = scalar_lea.vmem %s1, 752
  %253 = vst [vmem:[%s252] sm:$0xff] %v241
  %s254 = scalar_lea.vmem %s1, 880
  %255 = vst [vmem:[%s254] sm:$0xff] %v241
  %s256 = scalar_lea.vmem %s1, 1008
  %257 = vst [vmem:[%s256] sm:$0xff] %v241
  %s258 = scalar_lea.vmem %s1, 1136
  %259 = vst [vmem:[%s258] sm:$0xff] %v241
  %s260 = scalar_lea.vmem %s1, 1264
  %261 = vst [vmem:[%s260] sm:$0xff] %v241
  %s262 = scalar_lea.vmem %s1, 1392
  %263 = vst [vmem:[%s262] sm:$0xff] %v241
  %s264 = scalar_lea.vmem %s1, 1520
  %265 = vst [vmem:[%s264] sm:$0xff] %v241
  %s266 = scalar_lea.vmem %s1, 1648
  %267 = vst [vmem:[%s266] sm:$0xff] %v241
  %s268 = scalar_lea.vmem %s1, 1776
  %269 = vst [vmem:[%s268] sm:$0xff] %v241
  %s270 = scalar_lea.vmem %s1, 1904
  %271 = vst [vmem:[%s270] sm:$0xff] %v241
  %s272 = scalar_lea.vmem %s1, 2032
  %273 = vst [vmem:[%s272] sm:$0xff] %v241
  %s274 = scalar_lea.vmem %s1, 8
  %275 = vst [vmem:[%s274] sm:$0xff] %v4
  %s276 = scalar_lea.vmem %s1, 136
  %277 = vst [vmem:[%s276] sm:$0xff] %v4
  %s278 = scalar_lea.vmem %s1, 264
  %279 = vst [vmem:[%s278] sm:$0xff] %v4
  %s280 = scalar_lea.vmem %s1, 392
  %281 = vst [vmem:[%s280] sm:$0xff] %v4
  %s282 = scalar_lea.vmem %s1, 520
  %283 = vst [vmem:[%s282] sm:$0xff] %v4
  %s284 = scalar_lea.vmem %s1, 648
  %285 = vst [vmem:[%s284] sm:$0xff] %v4
  %s286 = scalar_lea.vmem %s1, 776
  %287 = vst [vmem:[%s286] sm:$0xff] %v4
  %s288 = scalar_lea.vmem %s1, 904
  %289 = vst [vmem:[%s288] sm:$0xff] %v4
  %s290 = scalar_lea.vmem %s1, 1032
  %291 = vst [vmem:[%s290] sm:$0xff] %v4
  %s292 = scalar_lea.vmem %s1, 1160
  %293 = vst [vmem:[%s292] sm:$0xff] %v4
  %s294 = scalar_lea.vmem %s1, 1288
  %295 = vst [vmem:[%s294] sm:$0xff] %v4
  %s296 = scalar_lea.vmem %s1, 1416
  %297 = vst [vmem:[%s296] sm:$0xff] %v4
  %s298 = scalar_lea.vmem %s1, 1544
  %299 = vst [vmem:[%s298] sm:$0xff] %v4
  %s300 = scalar_lea.vmem %s1, 1672
  %301 = vst [vmem:[%s300] sm:$0xff] %v4
  %s302 = scalar_lea.vmem %s1, 1800
  %303 = vst [vmem:[%s302] sm:$0xff] %v4
  %s304 = scalar_lea.vmem %s1, 1928
  %305 = vst [vmem:[%s304] sm:$0xff] %v4
  %s306 = scalar_lea.vmem %s1, 24
  %307 = vst [vmem:[%s306] sm:$0xff] %v37
  %s308 = scalar_lea.vmem %s1, 152
  %309 = vst [vmem:[%s308] sm:$0xff] %v37
  %s310 = scalar_lea.vmem %s1, 280
  %311 = vst [vmem:[%s310] sm:$0xff] %v37
  %s312 = scalar_lea.vmem %s1, 408
  %313 = vst [vmem:[%s312] sm:$0xff] %v37
  %s314 = scalar_lea.vmem %s1, 536
  %315 = vst [vmem:[%s314] sm:$0xff] %v37
  %s316 = scalar_lea.vmem %s1, 664
  %317 = vst [vmem:[%s316] sm:$0xff] %v37
  %s318 = scalar_lea.vmem %s1, 792
  %319 = vst [vmem:[%s318] sm:$0xff] %v37
  %s320 = scalar_lea.vmem %s1, 920
  %321 = vst [vmem:[%s320] sm:$0xff] %v37
  %s322 = scalar_lea.vmem %s1, 1048
  %323 = vst [vmem:[%s322] sm:$0xff] %v37
  %s324 = scalar_lea.vmem %s1, 1176
  %325 = vst [vmem:[%s324] sm:$0xff] %v37
  %s326 = scalar_lea.vmem %s1, 1304
  %327 = vst [vmem:[%s326] sm:$0xff] %v37
  %s328 = scalar_lea.vmem %s1, 1432
  %329 = vst [vmem:[%s328] sm:$0xff] %v37
  %s330 = scalar_lea.vmem %s1, 1560
  %331 = vst [vmem:[%s330] sm:$0xff] %v37
  %s332 = scalar_lea.vmem %s1, 1688
  %333 = vst [vmem:[%s332] sm:$0xff] %v37
  %s334 = scalar_lea.vmem %s1, 1816
  %335 = vst [vmem:[%s334] sm:$0xff] %v37
  %s336 = scalar_lea.vmem %s1, 1944
  %337 = vst [vmem:[%s336] sm:$0xff] %v37
  %s338 = scalar_lea.vmem %s1, 40
  %339 = vst [vmem:[%s338] sm:$0xff] %v71
  %s340 = scalar_lea.vmem %s1, 168
  %341 = vst [vmem:[%s340] sm:$0xff] %v71
  %s342 = scalar_lea.vmem %s1, 296
  %343 = vst [vmem:[%s342] sm:$0xff] %v71
  %s344 = scalar_lea.vmem %s1, 424
  %345 = vst [vmem:[%s344] sm:$0xff] %v71
  %s346 = scalar_lea.vmem %s1, 552
  %347 = vst [vmem:[%s346] sm:$0xff] %v71
  %s348 = scalar_lea.vmem %s1, 680
  %349 = vst [vmem:[%s348] sm:$0xff] %v71
  %s350 = scalar_lea.vmem %s1, 808
  %351 = vst [vmem:[%s350] sm:$0xff] %v71
  %s352 = scalar_lea.vmem %s1, 936
  %353 = vst [vmem:[%s352] sm:$0xff] %v71
  %s354 = scalar_lea.vmem %s1, 1064
  %355 = vst [vmem:[%s354] sm:$0xff] %v71
  %s356 = scalar_lea.vmem %s1, 1192
  %357 = vst [vmem:[%s356] sm:$0xff] %v71
  %s358 = scalar_lea.vmem %s1, 1320
  %359 = vst [vmem:[%s358] sm:$0xff] %v71
  %s360 = scalar_lea.vmem %s1, 1448
  %361 = vst [vmem:[%s360] sm:$0xff] %v71
  %s362 = scalar_lea.vmem %s1, 1576
  %363 = vst [vmem:[%s362] sm:$0xff] %v71
  %s364 = scalar_lea.vmem %s1, 1704
  %365 = vst [vmem:[%s364] sm:$0xff] %v71
  %s366 = scalar_lea.vmem %s1, 1832
  %367 = vst [vmem:[%s366] sm:$0xff] %v71
  %s368 = scalar_lea.vmem %s1, 1960
  %369 = vst [vmem:[%s368] sm:$0xff] %v71
  %s370 = scalar_lea.vmem %s1, 56
  %371 = vst [vmem:[%s370] sm:$0xff] %v105
  %s372 = scalar_lea.vmem %s1, 184
  %373 = vst [vmem:[%s372] sm:$0xff] %v105
  %s374 = scalar_lea.vmem %s1, 312
  %375 = vst [vmem:[%s374] sm:$0xff] %v105
  %s376 = scalar_lea.vmem %s1, 440
  %377 = vst [vmem:[%s376] sm:$0xff] %v105
  %s378 = scalar_lea.vmem %s1, 568
  %379 = vst [vmem:[%s378] sm:$0xff] %v105
  %s380 = scalar_lea.vmem %s1, 696
  %381 = vst [vmem:[%s380] sm:$0xff] %v105
  %s382 = scalar_lea.vmem %s1, 824
  %383 = vst [vmem:[%s382] sm:$0xff] %v105
  %s384 = scalar_lea.vmem %s1, 952
  %385 = vst [vmem:[%s384] sm:$0xff] %v105
  %s386 = scalar_lea.vmem %s1, 1080
  %387 = vst [vmem:[%s386] sm:$0xff] %v105
  %s388 = scalar_lea.vmem %s1, 1208
  %389 = vst [vmem:[%s388] sm:$0xff] %v105
  %s390 = scalar_lea.vmem %s1, 1336
  %391 = vst [vmem:[%s390] sm:$0xff] %v105
  %s392 = scalar_lea.vmem %s1, 1464
  %393 = vst [vmem:[%s392] sm:$0xff] %v105
  %s394 = scalar_lea.vmem %s1, 1592
  %395 = vst [vmem:[%s394] sm:$0xff] %v105
  %s396 = scalar_lea.vmem %s1, 1720
  %397 = vst [vmem:[%s396] sm:$0xff] %v105
  %s398 = scalar_lea.vmem %s1, 1848
  %399 = vst [vmem:[%s398] sm:$0xff] %v105
  %s400 = scalar_lea.vmem %s1, 1976
  %401 = vst [vmem:[%s400] sm:$0xff] %v105
  %s402 = scalar_lea.vmem %s1, 72
  %403 = vst [vmem:[%s402] sm:$0xff] %v139
  %s404 = scalar_lea.vmem %s1, 200
  %405 = vst [vmem:[%s404] sm:$0xff] %v139
  %s406 = scalar_lea.vmem %s1, 328
  %407 = vst [vmem:[%s406] sm:$0xff] %v139
  %s408 = scalar_lea.vmem %s1, 456
  %409 = vst [vmem:[%s408] sm:$0xff] %v139
  %s410 = scalar_lea.vmem %s1, 584
  %411 = vst [vmem:[%s410] sm:$0xff] %v139
  %s412 = scalar_lea.vmem %s1, 712
  %413 = vst [vmem:[%s412] sm:$0xff] %v139
  %s414 = scalar_lea.vmem %s1, 840
  %415 = vst [vmem:[%s414] sm:$0xff] %v139
  %s416 = scalar_lea.vmem %s1, 968
  %417 = vst [vmem:[%s416] sm:$0xff] %v139
  %s418 = scalar_lea.vmem %s1, 1096
  %419 = vst [vmem:[%s418] sm:$0xff] %v139
  %s420 = scalar_lea.vmem %s1, 1224
  %421 = vst [vmem:[%s420] sm:$0xff] %v139
  %s422 = scalar_lea.vmem %s1, 1352
  %423 = vst [vmem:[%s422] sm:$0xff] %v139
  %s424 = scalar_lea.vmem %s1, 1480
  %425 = vst [vmem:[%s424] sm:$0xff] %v139
  %s426 = scalar_lea.vmem %s1, 1608
  %427 = vst [vmem:[%s426] sm:$0xff] %v139
  %s428 = scalar_lea.vmem %s1, 1736
  %429 = vst [vmem:[%s428] sm:$0xff] %v139
  %s430 = scalar_lea.vmem %s1, 1864
  %431 = vst [vmem:[%s430] sm:$0xff] %v139
  %s432 = scalar_lea.vmem %s1, 1992
  %433 = vst [vmem:[%s432] sm:$0xff] %v139
  %s434 = scalar_lea.vmem %s1, 88
  %435 = vst [vmem:[%s434] sm:$0xff] %v173
  %s436 = scalar_lea.vmem %s1, 216
  %437 = vst [vmem:[%s436] sm:$0xff] %v173
  %s438 = scalar_lea.vmem %s1, 344
  %439 = vst [vmem:[%s438] sm:$0xff] %v173
  %s440 = scalar_lea.vmem %s1, 472
  %441 = vst [vmem:[%s440] sm:$0xff] %v173
  %s442 = scalar_lea.vmem %s1, 600
  %443 = vst [vmem:[%s442] sm:$0xff] %v173
  %s444 = scalar_lea.vmem %s1, 728
  %445 = vst [vmem:[%s444] sm:$0xff] %v173
  %s446 = scalar_lea.vmem %s1, 856
  %447 = vst [vmem:[%s446] sm:$0xff] %v173
  %s448 = scalar_lea.vmem %s1, 984
  %449 = vst [vmem:[%s448] sm:$0xff] %v173
  %s450 = scalar_lea.vmem %s1, 1112
  %451 = vst [vmem:[%s450] sm:$0xff] %v173
  %s452 = scalar_lea.vmem %s1, 1240
  %453 = vst [vmem:[%s452] sm:$0xff] %v173
  %s454 = scalar_lea.vmem %s1, 1368
  %455 = vst [vmem:[%s454] sm:$0xff] %v173
  %s456 = scalar_lea.vmem %s1, 1496
  %457 = vst [vmem:[%s456] sm:$0xff] %v173
  %s458 = scalar_lea.vmem %s1, 1624
  %459 = vst [vmem:[%s458] sm:$0xff] %v173
  %s460 = scalar_lea.vmem %s1, 1752
  %461 = vst [vmem:[%s460] sm:$0xff] %v173
  %s462 = scalar_lea.vmem %s1, 1880
  %463 = vst [vmem:[%s462] sm:$0xff] %v173
  %s464 = scalar_lea.vmem %s1, 2008
  %465 = vst [vmem:[%s464] sm:$0xff] %v173
  %s466 = scalar_lea.vmem %s1, 104
  %467 = vst [vmem:[%s466] sm:$0xff] %v207
  %s468 = scalar_lea.vmem %s1, 232
  %469 = vst [vmem:[%s468] sm:$0xff] %v207
  %s470 = scalar_lea.vmem %s1, 360
  %471 = vst [vmem:[%s470] sm:$0xff] %v207
  %s472 = scalar_lea.vmem %s1, 488
  %473 = vst [vmem:[%s472] sm:$0xff] %v207
  %s474 = scalar_lea.vmem %s1, 616
  %475 = vst [vmem:[%s474] sm:$0xff] %v207
  %s476 = scalar_lea.vmem %s1, 744
  %477 = vst [vmem:[%s476] sm:$0xff] %v207
  %s478 = scalar_lea.vmem %s1, 872
  %479 = vst [vmem:[%s478] sm:$0xff] %v207
  %s480 = scalar_lea.vmem %s1, 1000
  %481 = vst [vmem:[%s480] sm:$0xff] %v207
  %s482 = scalar_lea.vmem %s1, 1128
  %483 = vst [vmem:[%s482] sm:$0xff] %v207
  %s484 = scalar_lea.vmem %s1, 1256
  %485 = vst [vmem:[%s484] sm:$0xff] %v207
  %s486 = scalar_lea.vmem %s1, 1384
  %487 = vst [vmem:[%s486] sm:$0xff] %v207
  %s488 = scalar_lea.vmem %s1, 1512
  %489 = vst [vmem:[%s488] sm:$0xff] %v207
  %s490 = scalar_lea.vmem %s1, 1640
  %491 = vst [vmem:[%s490] sm:$0xff] %v207
  %s492 = scalar_lea.vmem %s1, 1768
  %493 = vst [vmem:[%s492] sm:$0xff] %v207
  %s494 = scalar_lea.vmem %s1, 1896
  %495 = vst [vmem:[%s494] sm:$0xff] %v207
  %s496 = scalar_lea.vmem %s1, 2024
  %497 = vst [vmem:[%s496] sm:$0xff] %v207
  %s498 = scalar_lea.vmem %s1, 120
  %499 = vst [vmem:[%s498] sm:$0xff] %v241
  %s500 = scalar_lea.vmem %s1, 248
  %501 = vst [vmem:[%s500] sm:$0xff] %v241
  %s502 = scalar_lea.vmem %s1, 376
  %503 = vst [vmem:[%s502] sm:$0xff] %v241
  %s504 = scalar_lea.vmem %s1, 504
  %505 = vst [vmem:[%s504] sm:$0xff] %v241
  %s506 = scalar_lea.vmem %s1, 632
  %507 = vst [vmem:[%s506] sm:$0xff] %v241
  %s508 = scalar_lea.vmem %s1, 760
  %509 = vst [vmem:[%s508] sm:$0xff] %v241
  %s510 = scalar_lea.vmem %s1, 888
  %511 = vst [vmem:[%s510] sm:$0xff] %v241
  %s512 = scalar_lea.vmem %s1, 1016
  %513 = vst [vmem:[%s512] sm:$0xff] %v241
  %s514 = scalar_lea.vmem %s1, 1144
  %515 = vst [vmem:[%s514] sm:$0xff] %v241
  %s516 = scalar_lea.vmem %s1, 1272
  %517 = vst [vmem:[%s516] sm:$0xff] %v241
  %s518 = scalar_lea.vmem %s1, 1400
  %519 = vst [vmem:[%s518] sm:$0xff] %v241
  %s520 = scalar_lea.vmem %s1, 1528
  %521 = vst [vmem:[%s520] sm:$0xff] %v241
  %s522 = scalar_lea.vmem %s1, 1656
  %523 = vst [vmem:[%s522] sm:$0xff] %v241
  %s524 = scalar_lea.vmem %s1, 1784
  %525 = vst [vmem:[%s524] sm:$0xff] %v241
  %s526 = scalar_lea.vmem %s1, 1912
  %527 = vst [vmem:[%s526] sm:$0xff] %v241
  %s528 = scalar_lea.vmem %s1, 2040
  %529 = vst [vmem:[%s528] sm:$0xff] %v241

// kernel: separable_downsample_conv.1
$region0: #{separable_downsample_conv.1}
  #allocation0 [shape = 'u32[]', space=smem, size = 0x4, offset = 0x4, fixed_abs, tag = 'smem constant byte address 0x4 - core index']
  #allocation1 [shape = 'u32[144,128]{1,0:T(1,128)}', space=vmem, size = 0x12000, scoped, tag = 'internal scratch']
  %s0 = inlined_call_operand.vmem [shape: f32[32,64], index: 0, kind: input, shape index: {}]
  %s1 = inlined_call_operand.vmem [shape: f32[128,128], index: 1, kind: input, shape index: {}]
  %s2 = inlined_call_operand.vmem [shape: f32[64,128], index: 2, kind: input, shape index: {}]
  %s3 = inlined_call_operand.vmem [shape: f32[1,128], index: 3, kind: input, shape index: {}]
  %s4 = inlined_call_operand.vmem [shape: f32[3,128,128], index: 4, kind: input, shape index: {}]
  %s5 = inlined_call_operand.vmem [shape: f32[1,128], index: 5, kind: input, shape index: {}]
  %s6 = inlined_call_operand.vmem [shape: f32[1,128], index: 6, kind: input, shape index: {}]
  %s7 = inlined_call_operand.vmem [shape: f32[1,128], index: 7, kind: input, shape index: {}]
  %s8 = inlined_call_operand.vmem [shape: f32[128,128], index: 8, kind: input, shape index: {}]
  %s9 = inlined_call_operand.vmem [shape: f32[1,128], index: 9, kind: input, shape index: {}]
  %s10 = inlined_call_operand.vmem [shape: f32[3,128,128], index: 10, kind: input, shape index: {}]
  %s11 = inlined_call_operand.vmem [shape: f32[1,128], index: 11, kind: input, shape index: {}]
  %s12 = inlined_call_operand.vmem [shape: f32[1,128], index: 12, kind: input, shape index: {}]
  %s13 = inlined_call_operand.vmem [shape: f32[1,128], index: 13, kind: input, shape index: {}]
  %s14 = inlined_call_operand.vmem [shape: f32[32,128], index: 14, kind: output, shape index: {}]
  %s15 = sld [smem:[#allocation0]]
  $region66: #{separable_downsample_conv.1} parent=0
    _
  %s17 = ssub.s32 1, %s15
  %s18 = scalar_select 0, %s17, %s15
  // Predicated region
  $region2: #{separable_downsample_conv.1} parent=0 // pred_check
    _
  $region3: #{separable_downsample_conv.1} parent=0 // pred_check_branch
    %20 = sbr.rel (0) target = $region5
  $region4: #{separable_downsample_conv.1} parent=0 // pred_region
    _
  $region5: #{separable_downsample_conv.1} parent=0 // pred_fallthru
    _
  // Predicated region
  $region6: #{separable_downsample_conv.1} parent=0 // pred_check
    _
  $region7: #{separable_downsample_conv.1} parent=0 // pred_check_branch
    %22 = sbr.rel (0) target = $region9
  $region8: #{separable_downsample_conv.1} parent=0 // pred_region
    _
  $region9: #{separable_downsample_conv.1} parent=0 // pred_fallthru
    _
  // Predicated region
  $region10: #{separable_downsample_conv.1} parent=0 // pred_check
    _
  $region11: #{separable_downsample_conv.1} parent=0 // pred_check_branch
    %24 = sbr.rel (0) target = $region13
  $region12: #{separable_downsample_conv.1} parent=0 // pred_region
    _
  $region13: #{separable_downsample_conv.1} parent=0 // pred_fallthru
    _
  // Predicated region
  $region14: #{separable_downsample_conv.1} parent=0 // pred_check
    _
  $region15: #{separable_downsample_conv.1} parent=0 // pred_check_branch
    %26 = sbr.rel (0) target = $region17
  $region16: #{separable_downsample_conv.1} parent=0 // pred_region
    _
  $region17: #{separable_downsample_conv.1} parent=0 // pred_fallthru
    _
  // Predicated region
  $region18: #{separable_downsample_conv.1} parent=0 // pred_check
    _
  $region19: #{separable_downsample_conv.1} parent=0 // pred_check_branch
    %28 = sbr.rel (0) target = $region21
  $region20: #{separable_downsample_conv.1} parent=0 // pred_region
    _
  $region21: #{separable_downsample_conv.1} parent=0 // pred_fallthru
    _
  // Predicated region
  $region22: #{separable_downsample_conv.1} parent=0 // pred_check
    _
  $region23: #{separable_downsample_conv.1} parent=0 // pred_check_branch
    %30 = sbr.rel (0) target = $region25
  $region24: #{separable_downsample_conv.1} parent=0 // pred_region
    _
  $region25: #{separable_downsample_conv.1} parent=0 // pred_fallthru
    _
  // Predicated region
  $region26: #{separable_downsample_conv.1} parent=0 // pred_check
    _
  $region27: #{separable_downsample_conv.1} parent=0 // pred_check_branch
    %32 = sbr.rel (0) target = $region29
  $region28: #{separable_downsample_conv.1} parent=0 // pred_region
    _
  $region29: #{separable_downsample_conv.1} parent=0 // pred_fallthru
    _
  // Predicated region
  $region30: #{separable_downsample_conv.1} parent=0 // pred_check
    _
  $region31: #{separable_downsample_conv.1} parent=0 // pred_check_branch
    %34 = sbr.rel (0) target = $region33
  $region32: #{separable_downsample_conv.1} parent=0 // pred_region
    _
  $region33: #{separable_downsample_conv.1} parent=0 // pred_fallthru
    _
  // Predicated region
  $region34: #{separable_downsample_conv.1} parent=0 // pred_check
    _
  $region35: #{separable_downsample_conv.1} parent=0 // pred_check_branch
    %36 = sbr.rel (0) target = $region37
  $region36: #{separable_downsample_conv.1} parent=0 // pred_region
    _
  $region37: #{separable_downsample_conv.1} parent=0 // pred_fallthru
    _
  // Predicated region
  $region38: #{separable_downsample_conv.1} parent=0 // pred_check
    _
  $region39: #{separable_downsample_conv.1} parent=0 // pred_check_branch
    %38 = sbr.rel (0) target = $region41
  $region40: #{separable_downsample_conv.1} parent=0 // pred_region
    _
  $region41: #{separable_downsample_conv.1} parent=0 // pred_fallthru
    _
  // Predicated region
  $region42: #{separable_downsample_conv.1} parent=0 // pred_check
    _
  $region43: #{separable_downsample_conv.1} parent=0 // pred_check_branch
    %40 = sbr.rel (0) target = $region45
  $region44: #{separable_downsample_conv.1} parent=0 // pred_region
    _
  $region45: #{separable_downsample_conv.1} parent=0 // pred_fallthru
    _
  // Predicated region
  $region46: #{separable_downsample_conv.1} parent=0 // pred_check
    _
  $region47: #{separable_downsample_conv.1} parent=0 // pred_check_branch
    %42 = sbr.rel (0) target = $region49
  $region48: #{separable_downsample_conv.1} parent=0 // pred_region
    _
  $region49: #{separable_downsample_conv.1} parent=0 // pred_fallthru
    _
  // Predicated region
  $region50: #{separable_downsample_conv.1} parent=0 // pred_check
    _
  $region51: #{separable_downsample_conv.1} parent=0 // pred_check_branch
    %44 = sbr.rel (0) target = $region53
  $region52: #{separable_downsample_conv.1} parent=0 // pred_region
    _
  $region53: #{separable_downsample_conv.1} parent=0 // pred_fallthru
    _
  // Predicated region
  $region54: #{separable_downsample_conv.1} parent=0 // pred_check
    _
  $region55: #{separable_downsample_conv.1} parent=0 // pred_check_branch
    %46 = sbr.rel (0) target = $region57
  $region56: #{separable_downsample_conv.1} parent=0 // pred_region
    _
  $region57: #{separable_downsample_conv.1} parent=0 // pred_fallthru
    _
  %v47 = vld [vmem:[%s1] sm:$0xff]
  %v48 = vld [vmem:[%s1 + $0x8] sm:$0xff]
  %v49 = vld [vmem:[%s1 + $0x10] sm:$0xff]
  %v50 = vld [vmem:[%s1 + $0x18] sm:$0xff]
  %v51 = vld [vmem:[%s1 + $0x20] sm:$0xff]
  %v52 = vld [vmem:[%s1 + $0x28] sm:$0xff]
  %v53 = vld [vmem:[%s1 + $0x30] sm:$0xff]
  %v54 = vld [vmem:[%s1 + $0x38] sm:$0xff]
  %v55 = vld [vmem:[%s1 + $0x40] sm:$0xff]
  %v56 = vld [vmem:[%s1 + $0x48] sm:$0xff]
  %v57 = vld [vmem:[%s1 + $0x50] sm:$0xff]
  %v58 = vld [vmem:[%s1 + $0x58] sm:$0xff]
  %v59 = vld [vmem:[%s1 + $0x60] sm:$0xff]
  %v60 = vld [vmem:[%s1 + $0x68] sm:$0xff]
  %v61 = vld [vmem:[%s1 + $0x70] sm:$0xff]
  %v62 = vld [vmem:[%s1 + $0x78] sm:$0xff]
  %v63 = vlaneseq
  %v64 = vshrl.u32 %v63, 7
  %v65 = vadd.s32 %v64, 8
  %v66 = vadd.s32 %v64, 16
  %v67 = vadd.s32 %v64, 24
  %vm68 = vcmp.lt.s32.totalorder %v64, 0
  %v69 = vsub.s32 0, %v64
  %v70 = vsel %vm68, %v69, %v64
  %v71 = vshrl.u32 %v70, 4
  %v72 = vand.u32 %v70, 15
  %v73 = vsub.s32 0, %v72
  %v74 = vsel %vm68, %v73, %v72
  %vm75 = vcmp.lt.s32.totalorder %v65, 0
  %v76 = vsub.s32 0, %v65
  %v77 = vsel %vm75, %v76, %v65
  %v78 = vshrl.u32 %v77, 4
  %v79 = vand.u32 %v77, 15
  %v80 = vsub.s32 0, %v79
  %v81 = vsel %vm75, %v80, %v79
  %vm82 = vcmp.lt.s32.totalorder %v66, 0
  %v83 = vsub.s32 0, %v66
  %v84 = vsel %vm82, %v83, %v66
  %v85 = vshrl.u32 %v84, 4
  %v86 = vand.u32 %v84, 15
  %v87 = vsub.s32 0, %v86
  %v88 = vsel %vm82, %v87, %v86
  %vm89 = vcmp.lt.s32.totalorder %v67, 0
  %v90 = vsub.s32 0, %v67
  %v91 = vsel %vm89, %v90, %v67
  %v92 = vshrl.u32 %v91, 4
  %v93 = vand.u32 %v91, 15
  %v94 = vsub.s32 0, %v93
  %v95 = vsel %vm89, %v94, %v93
  %vm96 = vcmp.ne.s32.totalorder %v74, 0
  %vm97 = vcmp.ne.s32.totalorder %v81, 0
  %vm98 = vcmp.ne.s32.totalorder %v88, 0
  %vm99 = vcmp.ne.s32.totalorder %v95, 0
  %vm100 = vcmp.lt.s32.totalorder %v74, 0
  %vm101 = vcmp.lt.s32.totalorder %v81, 0
  %vm102 = vcmp.lt.s32.totalorder %v88, 0
  %vm103 = vcmp.lt.s32.totalorder %v95, 0
  %vm104 = vmand %vm100, %vm96
  %vm105 = vmand %vm101, %vm97
  %vm106 = vmand %vm102, %vm98
  %vm107 = vmand %vm103, %vm99
  %v108 = vadd.s32 %v74, 16
  %v109 = vadd.s32 %v81, 16
  %v110 = vadd.s32 %v88, 16
  %v111 = vadd.s32 %v95, 16
  %v112 = vsel %vm104, %v108, %v74
  %v113 = vsel %vm105, %v109, %v81
  %v114 = vsel %vm106, %v110, %v88
  %v115 = vsel %vm107, %v111, %v95
  %vm116 = vcmp.gt.s32.totalorder %v112, 0
  %vm117 = vcmp.gt.s32.totalorder %v113, 0
  %vm118 = vcmp.gt.s32.totalorder %v114, 0
  %vm119 = vcmp.gt.s32.totalorder %v115, 0
  %vm120 = vcmp.lt.s32.totalorder %v112, 15
  %vm121 = vcmp.lt.s32.totalorder %v113, 15
  %vm122 = vcmp.lt.s32.totalorder %v114, 15
  %vm123 = vcmp.lt.s32.totalorder %v115, 15
  %v124 = vld [vmem:[%s0] sm:$0xff]
  %v125 = vld [vmem:[%s0 + $0x8] sm:$0xff]
  %v126 = vld [vmem:[%s0 + $0x10] sm:$0xff]
  %v127 = vld [vmem:[%s0 + $0x18] sm:$0xff]
  %v128 = vld [vmem:[%s2] sm:$0xff]
  %v129 = vld [vmem:[%s2 + $0x8] sm:$0xff]
  %v130 = vld [vmem:[%s2 + $0x10] sm:$0xff]
  %v131 = vld [vmem:[%s2 + $0x18] sm:$0xff]
  %v132 = vld [vmem:[%s2 + $0x20] sm:$0xff]
  %v133 = vld [vmem:[%s2 + $0x28] sm:$0xff]
  %v134 = vld [vmem:[%s2 + $0x30] sm:$0xff]
  %v135 = vld [vmem:[%s2 + $0x38] sm:$0xff]
  %v136 = vld [vmem:[%s3] sm:$0x1]
  %v138 = vlaneseq
  %v139 = vshrl.u32 %v138, 7
  %v140 = vsub.s32 0, %v139
  %v141 = vrot.slane %v136, %v140
  %vm143 = vcmask 523264
  %v145 = vsel %vm143, %v124, 0
  %v148 = vsel %vm143, %v125, 0
  %v151 = vsel %vm143, %v126, 0
  %v154 = vsel %vm143, %v127, 0
  %156 = vmatprep.subr.mxu0 0.0
  %157 = vmatpush1.msra.mxu0 %v128
  %158 = vmatprep.subr.mxu0 0.0
  %159 = vmatpush1.msra.mxu0 %v129
  %160 = vmatprep.subr.mxu0 0.0
  %161 = vmatpush1.msra.mxu0 %v130
  %162 = vmatprep.subr.mxu0 0.0
  %163 = vmatpush1.msra.mxu0 %v131
  %164 = vmatprep.subr.mxu0 0.0
  %165 = vmatpush1.msra.mxu0 %v132
  %166 = vmatprep.subr.mxu0 0.0
  %167 = vmatpush1.msra.mxu0 %v133
  %168 = vmatprep.subr.mxu0 0.0
  %169 = vmatpush1.msra.mxu0 %v134
  %170 = vmatprep.subr.mxu0 0.0
  %171 = vmatpush1.msra.mxu0 %v135
  %172 = vmatprep.subr.mxu0 0.0
  %173 = vmatpush1.msra.mxu0 0.0
  %174 = vmatprep.subr.mxu0 0.0
  %175 = vmatpush1.msra.mxu0 0.0
  %176 = vmatprep.subr.mxu0 0.0
  %177 = vmatpush1.msra.mxu0 0.0
  %178 = vmatprep.subr.mxu0 0.0
  %179 = vmatpush1.msra.mxu0 0.0
  %180 = vmatprep.subr.mxu0 0.0
  %181 = vmatpush1.msra.mxu0 0.0
  %182 = vmatprep.subr.mxu0 0.0
  %183 = vmatpush1.msra.mxu0 0.0
  %184 = vmatprep.subr.mxu0 0.0
  %185 = vmatpush1.msra.mxu0 0.0
  %186 = vmatprep.subr.mxu0 0.0
  %187 = vmatpush1.msra.mxu0 0.0
  %188 = vmatprep.subr.mxu0 0.0
  %189 = vmatpush1.msra.mxu0 0.0
  %190 = vmatprep.subr.mxu0 0.0
  %191 = vmatpush1.msra.mxu0 0.0
  %192 = vmatprep.subr.mxu0 0.0
  %193 = vmatpush1.msra.mxu0 0.0
  %194 = vmatprep.subr.mxu0 0.0
  %195 = vmatpush1.msra.mxu0 0.0
  %196 = vmatprep.subr.mxu0 0.0
  %197 = vmatpush1.msra.mxu0 0.0
  %198 = vmatprep.subr.mxu0 0.0
  %199 = vmatpush1.msra.mxu0 0.0
  %200 = vmatprep.subr.mxu0 0.0
  %201 = vmatpush1.msra.mxu0 0.0
  %202 = vmatprep.subr.mxu0 0.0
  %203 = vmatpush1.msra.mxu0 0.0
  %204 = vmatprep.subr.mxu0 0.0
  %205 = vmatpush1.msra.mxu0 0.0
  %206 = vmatprep.subr.mxu0 0.0
  %207 = vmatpush1.msra.mxu0 0.0
  %208 = vmatprep.subr.mxu0 0.0
  %209 = vmatpush1.msra.mxu0 0.0
  %210 = vmatprep.subr.mxu0 0.0
  %211 = vmatpush1.msra.mxu0 0.0
  %212 = vmatprep.subr.mxu0 0.0
  %213 = vmatpush1.msra.mxu0 0.0
  %214 = vmatprep.subr.mxu0 0.0
  %215 = vmatpush1.msra.mxu0 0.0
  %216 = vmatprep.subr.mxu0 0.0
  %217 = vmatpush1.msra.mxu0 0.0
  %218 = vmatprep.subr.mxu0 0.0
  %219 = vmatpush1.msra.mxu0 0.0
  %220 = vmatprep.mubr.f32.mxu0 0.0
  %221 = vmatmul.mubr.f32.gmra.mrb[0].mxu0 %v145
  %v222 = vpop.f32.mrb[0].mxu0
  %v223 = vadd.f32 %v141, %v222
  %v224 = vpop.f32.mrb[0].mxu0
  %225 = vmatprep.mubr.f32.mxu0 0.0
  %226 = vmatmul.mubr.f32.gmra.mrb[0].mxu0 %v148
  %v227 = vpop.f32.mrb[0].mxu0
  %v228 = vadd.f32 %v141, %v227
  %v229 = vpop.f32.mrb[0].mxu0
  %230 = vmatprep.mubr.f32.mxu0 0.0
  %231 = vmatmul.mubr.f32.gmra.mrb[0].mxu0 %v151
  %v232 = vpop.f32.mrb[0].mxu0
  %v233 = vadd.f32 %v141, %v232
  %v234 = vpop.f32.mrb[0].mxu0
  %235 = vmatprep.mubr.f32.mxu0 0.0
  %236 = vmatmul.mubr.f32.gmra.mrb[0].mxu0 %v154
  %v237 = vpop.f32.mrb[0].mxu0
  %v238 = vadd.f32 %v141, %v237
  %v239 = vpop.f32.mrb[0].mxu0
  %240 = vdwg.mxu0
  %v241 = vrot.slane %v223, 7
  %v242 = vrot.slane %v228, 7
  %v243 = vrot.slane %v233, 7
  %v244 = vrot.slane %v238, 7
  %vm245 = vcmp.lt.s32.totalorder %v64, 1
  %v246 = vsel %vm245, %v243, %v244
  %v247 = vsel %vm245, %v242, %v243
  %v248 = vsel %vm245, %v241, %v242
  %v249 = vsel %vm245, %v244, %v241
  %v250 = vsel %vm116, 1, 0
  %v251 = vsel %vm117, 1, 0
  %v252 = vsel %vm118, 1, 0
  %v253 = vsel %vm119, 1, 0
  %vm254 = vcmp.eq.s32.totalorder %v250, 1
  %vm255 = vcmp.eq.s32.totalorder %v251, 1
  %vm256 = vcmp.eq.s32.totalorder %v252, 1
  %vm257 = vcmp.eq.s32.totalorder %v253, 1
  %v258 = vsel %vm254, %v249, 0.0
  %v259 = vsel %vm255, %v248, 0.0
  %v260 = vsel %vm256, %v247, 0.0
  %v261 = vsel %vm257, %v246, 0.0
  %v262 = vrot.slane %v223, 1
  %v263 = vrot.slane %v228, 1
  %v264 = vrot.slane %v233, 1
  %v265 = vrot.slane %v238, 1
  %vm266 = vcmp.lt.s32.totalorder %v64, 7
  %v267 = vsel %vm266, %v264, %v265
  %v268 = vsel %vm266, %v263, %v264
  %v269 = vsel %vm266, %v262, %v263
  %v270 = vsel %vm266, %v265, %v262
  %v271 = vsel %vm120, 1, 0
  %v272 = vsel %vm121, 1, 0
  %v273 = vsel %vm122, 1, 0
  %v274 = vsel %vm123, 1, 0
  %vm275 = vcmp.eq.s32.totalorder %v271, 1
  %vm276 = vcmp.eq.s32.totalorder %v272, 1
  %vm277 = vcmp.eq.s32.totalorder %v273, 1
  %vm278 = vcmp.eq.s32.totalorder %v274, 1
  %v279 = vsel %vm275, %v269, 0.0
  %v280 = vsel %vm276, %v268, 0.0
  %v281 = vsel %vm277, %v267, 0.0
  %v282 = vsel %vm278, %v270, 0.0
  %v283 = vld [vmem:[%s4] sm:$0xff]
  %v284 = vld [vmem:[%s4 + $0x8] sm:$0xff]
  %v285 = vld [vmem:[%s4 + $0x10] sm:$0xff]
  %v286 = vld [vmem:[%s4 + $0x18] sm:$0xff]
  %v287 = vld [vmem:[%s4 + $0x20] sm:$0xff]
  %v288 = vld [vmem:[%s4 + $0x28] sm:$0xff]
  %v289 = vld [vmem:[%s4 + $0x30] sm:$0xff]
  %v290 = vld [vmem:[%s4 + $0x38] sm:$0xff]
  %v291 = vld [vmem:[%s4 + $0x40] sm:$0xff]
  %v292 = vld [vmem:[%s4 + $0x48] sm:$0xff]
  %v293 = vld [vmem:[%s4 + $0x50] sm:$0xff]
  %v294 = vld [vmem:[%s4 + $0x58] sm:$0xff]
  %v295 = vld [vmem:[%s4 + $0x60] sm:$0xff]
  %v296 = vld [vmem:[%s4 + $0x68] sm:$0xff]
  %v297 = vld [vmem:[%s4 + $0x70] sm:$0xff]
  %v298 = vld [vmem:[%s4 + $0x78] sm:$0xff]
  %s299 = scalar_lea.vmem %s4, 128
  %v300 = vld [vmem:[%s299] sm:$0xff]
  %v301 = vld [vmem:[%s299 + $0x8] sm:$0xff]
  %v302 = vld [vmem:[%s299 + $0x10] sm:$0xff]
  %v303 = vld [vmem:[%s299 + $0x18] sm:$0xff]
  %v304 = vld [vmem:[%s299 + $0x20] sm:$0xff]
  %v305 = vld [vmem:[%s299 + $0x28] sm:$0xff]
  %v306 = vld [vmem:[%s299 + $0x30] sm:$0xff]
  %v307 = vld [vmem:[%s299 + $0x38] sm:$0xff]
  %v308 = vld [vmem:[%s299 + $0x40] sm:$0xff]
  %v309 = vld [vmem:[%s299 + $0x48] sm:$0xff]
  %v310 = vld [vmem:[%s299 + $0x50] sm:$0xff]
  %v311 = vld [vmem:[%s299 + $0x58] sm:$0xff]
  %v312 = vld [vmem:[%s299 + $0x60] sm:$0xff]
  %v313 = vld [vmem:[%s299 + $0x68] sm:$0xff]
  %v314 = vld [vmem:[%s299 + $0x70] sm:$0xff]
  %v315 = vld [vmem:[%s299 + $0x78] sm:$0xff]
  %316 = vmatprep.subr.mxu0 0.0
  %317 = vmatpush1.msra.mxu0 %v300
  %318 = vmatprep.subr.mxu0 0.0
  %319 = vmatpush1.msra.mxu0 %v301
  %320 = vmatprep.subr.mxu0 0.0
  %321 = vmatpush1.msra.mxu0 %v302
  %322 = vmatprep.subr.mxu0 0.0
  %323 = vmatpush1.msra.mxu0 %v303
  %324 = vmatprep.subr.mxu0 0.0
  %325 = vmatpush1.msra.mxu0 %v304
  %326 = vmatprep.subr.mxu0 0.0
  %327 = vmatpush1.msra.mxu0 %v305
  %328 = vmatprep.subr.mxu0 0.0
  %329 = vmatpush1.msra.mxu0 %v306
  %330 = vmatprep.subr.mxu0 0.0
  %331 = vmatpush1.msra.mxu0 %v307
  %332 = vmatprep.subr.mxu0 0.0
  %333 = vmatpush1.msra.mxu0 %v308
  %334 = vmatprep.subr.mxu0 0.0
  %335 = vmatpush1.msra.mxu0 %v309
  %336 = vmatprep.subr.mxu0 0.0
  %337 = vmatpush1.msra.mxu0 %v310
  %338 = vmatprep.subr.mxu0 0.0
  %339 = vmatpush1.msra.mxu0 %v311
  %340 = vmatprep.subr.mxu0 0.0
  %341 = vmatpush1.msra.mxu0 %v312
  %342 = vmatprep.subr.mxu0 0.0
  %343 = vmatpush1.msra.mxu0 %v313
  %344 = vmatprep.subr.mxu0 0.0
  %345 = vmatpush1.msra.mxu0 %v314
  %346 = vmatprep.subr.mxu0 0.0
  %347 = vmatpush1.msra.mxu0 %v315
  %348 = vmatprep.subr.mxu0 0.0
  %349 = vmatpush1.msra.mxu0 0.0
  %350 = vmatprep.subr.mxu0 0.0
  %351 = vmatpush1.msra.mxu0 0.0
  %352 = vmatprep.subr.mxu0 0.0
  %353 = vmatpush1.msra.mxu0 0.0
  %354 = vmatprep.subr.mxu0 0.0
  %355 = vmatpush1.msra.mxu0 0.0
  %356 = vmatprep.subr.mxu0 0.0
  %357 = vmatpush1.msra.mxu0 0.0
  %358 = vmatprep.subr.mxu0 0.0
  %359 = vmatpush1.msra.mxu0 0.0
  %360 = vmatprep.subr.mxu0 0.0
  %361 = vmatpush1.msra.mxu0 0.0
  %362 = vmatprep.subr.mxu0 0.0
  %363 = vmatpush1.msra.mxu0 0.0
  %364 = vmatprep.subr.mxu0 0.0
  %365 = vmatpush1.msra.mxu0 0.0
  %366 = vmatprep.subr.mxu0 0.0
  %367 = vmatpush1.msra.mxu0 0.0
  %368 = vmatprep.subr.mxu0 0.0
  %369 = vmatpush1.msra.mxu0 0.0
  %370 = vmatprep.subr.mxu0 0.0
  %371 = vmatpush1.msra.mxu0 0.0
  %372 = vmatprep.subr.mxu0 0.0
  %373 = vmatpush1.msra.mxu0 0.0
  %374 = vmatprep.subr.mxu0 0.0
  %375 = vmatpush1.msra.mxu0 0.0
  %376 = vmatprep.subr.mxu0 0.0
  %377 = vmatpush1.msra.mxu0 0.0
  %378 = vmatprep.subr.mxu0 0.0
  %379 = vmatpush1.msra.mxu0 0.0
  %380 = vmatprep.mubr.f32.mxu0 0.0
  %381 = vmatmul.mubr.f32.gmra.mrb[0].mxu0 %v223
  %v382 = vpop.f32.mrb[0].mxu0
  %v383 = vadd.f32 0.0, %v382
  %v384 = vpop.f32.mrb[0].mxu0
  %385 = vmatprep.mubr.f32.mxu0 0.0
  %386 = vmatmul.mubr.f32.gmra.mrb[0].mxu0 %v228
  %v387 = vpop.f32.mrb[0].mxu0
  %v388 = vadd.f32 0.0, %v387
  %v389 = vpop.f32.mrb[0].mxu0
  %390 = vmatprep.mubr.f32.mxu0 0.0
  %391 = vmatmul.mubr.f32.gmra.mrb[0].mxu0 %v233
  %v392 = vpop.f32.mrb[0].mxu0
  %v393 = vadd.f32 0.0, %v392
  %v394 = vpop.f32.mrb[0].mxu0
  %395 = vmatprep.mubr.f32.mxu0 0.0
  %396 = vmatmul.mubr.f32.gmra.mrb[0].mxu0 %v238
  %v397 = vpop.f32.mrb[0].mxu0
  %v398 = vadd.f32 0.0, %v397
  %v399 = vpop.f32.mrb[0].mxu0
  %400 = vdwg.mxu0
  %401 = vmatprep.subr.mxu0 0.0
  %402 = vmatpush1.msra.mxu0 %v283
  %403 = vmatprep.subr.mxu0 0.0
  %404 = vmatpush1.msra.mxu0 %v284
  %405 = vmatprep.subr.mxu0 0.0
  %406 = vmatpush1.msra.mxu0 %v285
  %407 = vmatprep.subr.mxu0 0.0
  %408 = vmatpush1.msra.mxu0 %v286
  %409 = vmatprep.subr.mxu0 0.0
  %410 = vmatpush1.msra.mxu0 %v287
  %411 = vmatprep.subr.mxu0 0.0
  %412 = vmatpush1.msra.mxu0 %v288
  %413 = vmatprep.subr.mxu0 0.0
  %414 = vmatpush1.msra.mxu0 %v289
  %415 = vmatprep.subr.mxu0 0.0
  %416 = vmatpush1.msra.mxu0 %v290
  %417 = vmatprep.subr.mxu0 0.0
  %418 = vmatpush1.msra.mxu0 %v291
  %419 = vmatprep.subr.mxu0 0.0
  %420 = vmatpush1.msra.mxu0 %v292
  %421 = vmatprep.subr.mxu0 0.0
  %422 = vmatpush1.msra.mxu0 %v293
  %423 = vmatprep.subr.mxu0 0.0
  %424 = vmatpush1.msra.mxu0 %v294
  %425 = vmatprep.subr.mxu0 0.0
  %426 = vmatpush1.msra.mxu0 %v295
  %427 = vmatprep.subr.mxu0 0.0
  %428 = vmatpush1.msra.mxu0 %v296
  %429 = vmatprep.subr.mxu0 0.0
  %430 = vmatpush1.msra.mxu0 %v297
  %431 = vmatprep.subr.mxu0 0.0
  %432 = vmatpush1.msra.mxu0 %v298
  %433 = vmatprep.subr.mxu0 0.0
  %434 = vmatpush1.msra.mxu0 0.0
  %435 = vmatprep.subr.mxu0 0.0
  %436 = vmatpush1.msra.mxu0 0.0
  %437 = vmatprep.subr.mxu0 0.0
  %438 = vmatpush1.msra.mxu0 0.0
  %439 = vmatprep.subr.mxu0 0.0
  %440 = vmatpush1.msra.mxu0 0.0
  %441 = vmatprep.subr.mxu0 0.0
  %442 = vmatpush1.msra.mxu0 0.0
  %443 = vmatprep.subr.mxu0 0.0
  %444 = vmatpush1.msra.mxu0 0.0
  %445 = vmatprep.subr.mxu0 0.0
  %446 = vmatpush1.msra.mxu0 0.0
  %447 = vmatprep.subr.mxu0 0.0
  %448 = vmatpush1.msra.mxu0 0.0
  %449 = vmatprep.subr.mxu0 0.0
  %450 = vmatpush1.msra.mxu0 0.0
  %451 = vmatprep.subr.mxu0 0.0
  %452 = vmatpush1.msra.mxu0 0.0
  %453 = vmatprep.subr.mxu0 0.0
  %454 = vmatpush1.msra.mxu0 0.0
  %455 = vmatprep.subr.mxu0 0.0
  %456 = vmatpush1.msra.mxu0 0.0
  %457 = vmatprep.subr.mxu0 0.0
  %458 = vmatpush1.msra.mxu0 0.0
  %459 = vmatprep.subr.mxu0 0.0
  %460 = vmatpush1.msra.mxu0 0.0
  %461 = vmatprep.subr.mxu0 0.0
  %462 = vmatpush1.msra.mxu0 0.0
  %463 = vmatprep.subr.mxu0 0.0
  %464 = vmatpush1.msra.mxu0 0.0
  %465 = vmatprep.mubr.f32.mxu0 0.0
  %466 = vmatmul.mubr.f32.gmra.mrb[0].mxu0 %v258
  %v467 = vpop.f32.mrb[0].mxu0
  %v468 = vadd.f32 %v383, %v467
  %v469 = vpop.f32.mrb[0].mxu0
  %470 = vmatprep.mubr.f32.mxu0 0.0
  %471 = vmatmul.mubr.f32.gmra.mrb[0].mxu0 %v259
  %v472 = vpop.f32.mrb[0].mxu0
  %v473 = vadd.f32 %v388, %v472
  %v474 = vpop.f32.mrb[0].mxu0
  %475 = vmatprep.mubr.f32.mxu0 0.0
  %476 = vmatmul.mubr.f32.gmra.mrb[0].mxu0 %v260
  %v477 = vpop.f32.mrb[0].mxu0
  %v478 = vadd.f32 %v393, %v477
  %v479 = vpop.f32.mrb[0].mxu0
  %480 = vmatprep.mubr.f32.mxu0 0.0
  %481 = vmatmul.mubr.f32.gmra.mrb[0].mxu0 %v261
  %v482 = vpop.f32.mrb[0].mxu0
  %v483 = vadd.f32 %v398, %v482
  %v484 = vpop.f32.mrb[0].mxu0
  %485 = vdwg.mxu0
  %s486 = scalar_lea.vmem %s4, 256
  %v487 = vld [vmem:[%s486] sm:$0xff]
  %v488 = vld [vmem:[%s486 + $0x8] sm:$0xff]
  %v489 = vld [vmem:[%s486 + $0x10] sm:$0xff]
  %v490 = vld [vmem:[%s486 + $0x18] sm:$0xff]
  %v491 = vld [vmem:[%s486 + $0x20] sm:$0xff]
  %v492 = vld [vmem:[%s486 + $0x28] sm:$0xff]
  %v493 = vld [vmem:[%s486 + $0x30] sm:$0xff]
  %v494 = vld [vmem:[%s486 + $0x38] sm:$0xff]
  %v495 = vld [vmem:[%s486 + $0x40] sm:$0xff]
  %v496 = vld [vmem:[%s486 + $0x48] sm:$0xff]
  %v497 = vld [vmem:[%s486 + $0x50] sm:$0xff]
  %v498 = vld [vmem:[%s486 + $0x58] sm:$0xff]
  %v499 = vld [vmem:[%s486 + $0x60] sm:$0xff]
  %v500 = vld [vmem:[%s486 + $0x68] sm:$0xff]
  %v501 = vld [vmem:[%s486 + $0x70] sm:$0xff]
  %v502 = vld [vmem:[%s486 + $0x78] sm:$0xff]
  %503 = vmatprep.subr.mxu0 0.0
  %504 = vmatpush1.msra.mxu0 %v487
  %505 = vmatprep.subr.mxu0 0.0
  %506 = vmatpush1.msra.mxu0 %v488
  %507 = vmatprep.subr.mxu0 0.0
  %508 = vmatpush1.msra.mxu0 %v489
  %509 = vmatprep.subr.mxu0 0.0
  %510 = vmatpush1.msra.mxu0 %v490
  %511 = vmatprep.subr.mxu0 0.0
  %512 = vmatpush1.msra.mxu0 %v491
  %513 = vmatprep.subr.mxu0 0.0
  %514 = vmatpush1.msra.mxu0 %v492
  %515 = vmatprep.subr.mxu0 0.0
  %516 = vmatpush1.msra.mxu0 %v493
  %517 = vmatprep.subr.mxu0 0.0
  %518 = vmatpush1.msra.mxu0 %v494
  %519 = vmatprep.subr.mxu0 0.0
  %520 = vmatpush1.msra.mxu0 %v495
  %521 = vmatprep.subr.mxu0 0.0
  %522 = vmatpush1.msra.mxu0 %v496
  %523 = vmatprep.subr.mxu0 0.0
  %524 = vmatpush1.msra.mxu0 %v497
  %525 = vmatprep.subr.mxu0 0.0
  %526 = vmatpush1.msra.mxu0 %v498
  %527 = vmatprep.subr.mxu0 0.0
  %528 = vmatpush1.msra.mxu0 %v499
  %529 = vmatprep.subr.mxu0 0.0
  %530 = vmatpush1.msra.mxu0 %v500
  %531 = vmatprep.subr.mxu0 0.0
  %532 = vmatpush1.msra.mxu0 %v501
  %533 = vmatprep.subr.mxu0 0.0
  %534 = vmatpush1.msra.mxu0 %v502
  %535 = vmatprep.subr.mxu0 0.0
  %536 = vmatpush1.msra.mxu0 0.0
  %537 = vmatprep.subr.mxu0 0.0
  %538 = vmatpush1.msra.mxu0 0.0
  %539 = vmatprep.subr.mxu0 0.0
  %540 = vmatpush1.msra.mxu0 0.0
  %541 = vmatprep.subr.mxu0 0.0
  %542 = vmatpush1.msra.mxu0 0.0
  %543 = vmatprep.subr.mxu0 0.0
  %544 = vmatpush1.msra.mxu0 0.0
  %545 = vmatprep.subr.mxu0 0.0
  %546 = vmatpush1.msra.mxu0 0.0
  %547 = vmatprep.subr.mxu0 0.0
  %548 = vmatpush1.msra.mxu0 0.0
  %549 = vmatprep.subr.mxu0 0.0
  %550 = vmatpush1.msra.mxu0 0.0
  %551 = vmatprep.subr.mxu0 0.0
  %552 = vmatpush1.msra.mxu0 0.0
  %553 = vmatprep.subr.mxu0 0.0
  %554 = vmatpush1.msra.mxu0 0.0
  %555 = vmatprep.subr.mxu0 0.0
  %556 = vmatpush1.msra.mxu0 0.0
  %557 = vmatprep.subr.mxu0 0.0
  %558 = vmatpush1.msra.mxu0 0.0
  %559 = vmatprep.subr.mxu0 0.0
  %560 = vmatpush1.msra.mxu0 0.0
  %561 = vmatprep.subr.mxu0 0.0
  %562 = vmatpush1.msra.mxu0 0.0
  %563 = vmatprep.subr.mxu0 0.0
  %564 = vmatpush1.msra.mxu0 0.0
  %565 = vmatprep.subr.mxu0 0.0
  %566 = vmatpush1.msra.mxu0 0.0
  %567 = vmatprep.mubr.f32.mxu0 0.0
  %568 = vmatmul.mubr.f32.gmra.mrb[0].mxu0 %v279
  %v569 = vpop.f32.mrb[0].mxu0
  %v570 = vadd.f32 0.0, %v569
  %v571 = vpop.f32.mrb[0].mxu0
  %572 = vmatprep.mubr.f32.mxu0 0.0
  %573 = vmatmul.mubr.f32.gmra.mrb[0].mxu0 %v280
  %v574 = vpop.f32.mrb[0].mxu0
  %v575 = vadd.f32 0.0, %v574
  %v576 = vpop.f32.mrb[0].mxu0
  %577 = vmatprep.mubr.f32.mxu0 0.0
  %578 = vmatmul.mubr.f32.gmra.mrb[0].mxu0 %v281
  %v579 = vpop.f32.mrb[0].mxu0
  %v580 = vadd.f32 0.0, %v579
  %v581 = vpop.f32.mrb[0].mxu0
  %582 = vmatprep.mubr.f32.mxu0 0.0
  %583 = vmatmul.mubr.f32.gmra.mrb[0].mxu0 %v282
  %v584 = vpop.f32.mrb[0].mxu0
  %v585 = vadd.f32 0.0, %v584
  %v586 = vpop.f32.mrb[0].mxu0
  %587 = vdwg.mxu0
  %v588 = vadd.f32 %v468, %v570
  %v589 = vadd.f32 %v473, %v575
  %v590 = vadd.f32 %v478, %v580
  %v591 = vadd.f32 %v483, %v585
  %v592 = vld [vmem:[%s5] sm:$0x1]
  %v594 = vlaneseq
  %v595 = vshrl.u32 %v594, 7
  %v596 = vsub.s32 0, %v595
  %v597 = vrot.slane %v592, %v596
  %v599 = vadd.f32 %v588, %v597
  %v600 = vadd.f32 %v589, %v597
  %v601 = vadd.f32 %v590, %v597
  %v602 = vadd.f32 %v591, %v597
  %v603 = vmax.f32 %v599, 0.0
  %v604 = vmax.f32 %v600, 0.0
  %v605 = vmax.f32 %v601, 0.0
  %v606 = vmax.f32 %v602, 0.0
  %v607 = vadd.f32 %v603, %v604
  %v608 = vadd.f32 %v607, %v605
  %v609 = vadd.f32 %v608, %v606
  %v610 = vrot.slane %v609, 4
  %v611 = vadd.f32 %v609, %v610
  %v612 = vrot.slane %v611, 2
  %v613 = vadd.f32 %v611, %v612
  %v614 = vrot.slane %v613, 1
  %v615 = vadd.f32 %v613, %v614
  %v616 = vmul.f32 %v603, %v603
  %v617 = vmul.f32 %v604, %v604
  %v618 = vmul.f32 %v605, %v605
  %v619 = vmul.f32 %v606, %v606
  %v620 = vadd.f32 %v616, %v617
  %v621 = vadd.f32 %v620, %v618
  %v622 = vadd.f32 %v621, %v619
  %v623 = vrot.slane %v622, 4
  %v624 = vadd.f32 %v622, %v623
  %v625 = vrot.slane %v624, 2
  %v626 = vadd.f32 %v624, %v625
  %v627 = vrot.slane %v626, 1
  %v628 = vadd.f32 %v626, %v627
  %629 = vmatprep.subr.mxu0 0.0
  %630 = vmatpush1.msra.mxu0 %v47
  %631 = vmatprep.subr.mxu0 0.0
  %632 = vmatpush1.msra.mxu0 %v48
  %633 = vmatprep.subr.mxu0 0.0
  %634 = vmatpush1.msra.mxu0 %v49
  %635 = vmatprep.subr.mxu0 0.0
  %636 = vmatpush1.msra.mxu0 %v50
  %637 = vmatprep.subr.mxu0 0.0
  %638 = vmatpush1.msra.mxu0 %v51
  %639 = vmatprep.subr.mxu0 0.0
  %640 = vmatpush1.msra.mxu0 %v52
  %641 = vmatprep.subr.mxu0 0.0
  %642 = vmatpush1.msra.mxu0 %v53
  %643 = vmatprep.subr.mxu0 0.0
  %644 = vmatpush1.msra.mxu0 %v54
  %645 = vmatprep.subr.mxu0 0.0
  %646 = vmatpush1.msra.mxu0 %v55
  %647 = vmatprep.subr.mxu0 0.0
  %648 = vmatpush1.msra.mxu0 %v56
  %649 = vmatprep.subr.mxu0 0.0
  %650 = vmatpush1.msra.mxu0 %v57
  %651 = vmatprep.subr.mxu0 0.0
  %652 = vmatpush1.msra.mxu0 %v58
  %653 = vmatprep.subr.mxu0 0.0
  %654 = vmatpush1.msra.mxu0 %v59
  %655 = vmatprep.subr.mxu0 0.0
  %656 = vmatpush1.msra.mxu0 %v60
  %657 = vmatprep.subr.mxu0 0.0
  %658 = vmatpush1.msra.mxu0 %v61
  %659 = vmatprep.subr.mxu0 0.0
  %660 = vmatpush1.msra.mxu0 %v62
  %661 = vmatprep.subr.mxu0 0.0
  %662 = vmatpush1.msra.mxu0 0.0
  %663 = vmatprep.subr.mxu0 0.0
  %664 = vmatpush1.msra.mxu0 0.0
  %665 = vmatprep.subr.mxu0 0.0
  %666 = vmatpush1.msra.mxu0 0.0
  %667 = vmatprep.subr.mxu0 0.0
  %668 = vmatpush1.msra.mxu0 0.0
  %669 = vmatprep.subr.mxu0 0.0
  %670 = vmatpush1.msra.mxu0 0.0
  %671 = vmatprep.subr.mxu0 0.0
  %672 = vmatpush1.msra.mxu0 0.0
  %673 = vmatprep.subr.mxu0 0.0
  %674 = vmatpush1.msra.mxu0 0.0
  %675 = vmatprep.subr.mxu0 0.0
  %676 = vmatpush1.msra.mxu0 0.0
  %677 = vmatprep.subr.mxu0 0.0
  %678 = vmatpush1.msra.mxu0 0.0
  %679 = vmatprep.subr.mxu0 0.0
  %680 = vmatpush1.msra.mxu0 0.0
  %681 = vmatprep.subr.mxu0 0.0
  %682 = vmatpush1.msra.mxu0 0.0
  %683 = vmatprep.subr.mxu0 0.0
  %684 = vmatpush1.msra.mxu0 0.0
  %685 = vmatprep.subr.mxu0 0.0
  %686 = vmatpush1.msra.mxu0 0.0
  %687 = vmatprep.subr.mxu0 0.0
  %688 = vmatpush1.msra.mxu0 0.0
  %689 = vmatprep.subr.mxu0 0.0
  %690 = vmatpush1.msra.mxu0 0.0
  %691 = vmatprep.subr.mxu0 0.0
  %692 = vmatpush1.msra.mxu0 0.0
  %693 = vmatprep.mubr.f32.mxu0 0.0
  %694 = vmatmul.mubr.f32.gmra.mrb[0].mxu0 %v615
  %v695 = vpop.f32.mrb[0].mxu0
  %v696 = vadd.f32 0.0, %v695
  %v697 = vpop.f32.mrb[0].mxu0
  %698 = vdwg.mxu0
  %v699 = vmul.f32 %v696, 0.001953125
  %700 = vmatprep.subr.mxu0 0.0
  %701 = vmatpush1.msra.mxu0 %v47
  %702 = vmatprep.subr.mxu0 0.0
  %703 = vmatpush1.msra.mxu0 %v48
  %704 = vmatprep.subr.mxu0 0.0
  %705 = vmatpush1.msra.mxu0 %v49
  %706 = vmatprep.subr.mxu0 0.0
  %707 = vmatpush1.msra.mxu0 %v50
  %708 = vmatprep.subr.mxu0 0.0
  %709 = vmatpush1.msra.mxu0 %v51
  %710 = vmatprep.subr.mxu0 0.0
  %711 = vmatpush1.msra.mxu0 %v52
  %712 = vmatprep.subr.mxu0 0.0
  %713 = vmatpush1.msra.mxu0 %v53
  %714 = vmatprep.subr.mxu0 0.0
  %715 = vmatpush1.msra.mxu0 %v54
  %716 = vmatprep.subr.mxu0 0.0
  %717 = vmatpush1.msra.mxu0 %v55
  %718 = vmatprep.subr.mxu0 0.0
  %719 = vmatpush1.msra.mxu0 %v56
  %720 = vmatprep.subr.mxu0 0.0
  %721 = vmatpush1.msra.mxu0 %v57
  %722 = vmatprep.subr.mxu0 0.0
  %723 = vmatpush1.msra.mxu0 %v58
  %724 = vmatprep.subr.mxu0 0.0
  %725 = vmatpush1.msra.mxu0 %v59
  %726 = vmatprep.subr.mxu0 0.0
  %727 = vmatpush1.msra.mxu0 %v60
  %728 = vmatprep.subr.mxu0 0.0
  %729 = vmatpush1.msra.mxu0 %v61
  %730 = vmatprep.subr.mxu0 0.0
  %731 = vmatpush1.msra.mxu0 %v62
  %732 = vmatprep.subr.mxu0 0.0
  %733 = vmatpush1.msra.mxu0 0.0
  %734 = vmatprep.subr.mxu0 0.0
  %735 = vmatpush1.msra.mxu0 0.0
  %736 = vmatprep.subr.mxu0 0.0
  %737 = vmatpush1.msra.mxu0 0.0
  %738 = vmatprep.subr.mxu0 0.0
  %739 = vmatpush1.msra.mxu0 0.0
  %740 = vmatprep.subr.mxu0 0.0
  %741 = vmatpush1.msra.mxu0 0.0
  %742 = vmatprep.subr.mxu0 0.0
  %743 = vmatpush1.msra.mxu0 0.0
  %744 = vmatprep.subr.mxu0 0.0
  %745 = vmatpush1.msra.mxu0 0.0
  %746 = vmatprep.subr.mxu0 0.0
  %747 = vmatpush1.msra.mxu0 0.0
  %748 = vmatprep.subr.mxu0 0.0
  %749 = vmatpush1.msra.mxu0 0.0
  %750 = vmatprep.subr.mxu0 0.0
  %751 = vmatpush1.msra.mxu0 0.0
  %752 = vmatprep.subr.mxu0 0.0
  %753 = vmatpush1.msra.mxu0 0.0
  %754 = vmatprep.subr.mxu0 0.0
  %755 = vmatpush1.msra.mxu0 0.0
  %756 = vmatprep.subr.mxu0 0.0
  %757 = vmatpush1.msra.mxu0 0.0
  %758 = vmatprep.subr.mxu0 0.0
  %759 = vmatpush1.msra.mxu0 0.0
  %760 = vmatprep.subr.mxu0 0.0
  %761 = vmatpush1.msra.mxu0 0.0
  %762 = vmatprep.subr.mxu0 0.0
  %763 = vmatpush1.msra.mxu0 0.0
  %764 = vmatprep.mubr.f32.mxu0 0.0
  %765 = vmatmul.mubr.f32.gmra.mrb[0].mxu0 %v628
  %v766 = vpop.f32.mrb[0].mxu0
  %v767 = vadd.f32 0.0, %v766
  %v768 = vpop.f32.mrb[0].mxu0
  %769 = vdwg.mxu0
  %v770 = vmul.f32 %v767, 0.001953125
  %v771 = vmul.f32 %v699, %v699
  %v772 = vsub.f32 %v770, %v771
  %v773 = vmax.f32 %v772, 0.0
  %v774 = vld [vmem:[%s6] sm:$0x1]
  %v775 = vadd.f32 %v773, 1e-05
  %v776 = vrsqrt.pop %v775
  %v777 = vmul.f32 %v774, %v776
  %v778 = vld [vmem:[%s7] sm:$0x1]
  %v779 = vmul.f32 %v699, %v777
  %v780 = vsub.f32 %v778, %v779
  %v782 = vlaneseq
  %v783 = vshrl.u32 %v782, 7
  %v784 = vsub.s32 0, %v783
  %v785 = vrot.slane %v777, %v784
  %v787 = vmul.f32 %v603, %v785
  %v788 = vmul.f32 %v604, %v785
  %v789 = vmul.f32 %v605, %v785
  %v790 = vmul.f32 %v606, %v785
  %v792 = vlaneseq
  %v793 = vshrl.u32 %v792, 7
  %v794 = vsub.s32 0, %v793
  %v795 = vrot.slane %v780, %v794
  %v797 = vadd.f32 %v787, %v795
  %v798 = vadd.f32 %v788, %v795
  %v799 = vadd.f32 %v789, %v795
  %v800 = vadd.f32 %v790, %v795
  %v801 = vld [vmem:[%s8] sm:$0xff]
  %v802 = vld [vmem:[%s8 + $0x8] sm:$0xff]
  %v803 = vld [vmem:[%s8 + $0x10] sm:$0xff]
  %v804 = vld [vmem:[%s8 + $0x18] sm:$0xff]
  %v805 = vld [vmem:[%s8 + $0x20] sm:$0xff]
  %v806 = vld [vmem:[%s8 + $0x28] sm:$0xff]
  %v807 = vld [vmem:[%s8 + $0x30] sm:$0xff]
  %v808 = vld [vmem:[%s8 + $0x38] sm:$0xff]
  %v809 = vld [vmem:[%s8 + $0x40] sm:$0xff]
  %v810 = vld [vmem:[%s8 + $0x48] sm:$0xff]
  %v811 = vld [vmem:[%s8 + $0x50] sm:$0xff]
  %v812 = vld [vmem:[%s8 + $0x58] sm:$0xff]
  %v813 = vld [vmem:[%s8 + $0x60] sm:$0xff]
  %v814 = vld [vmem:[%s8 + $0x68] sm:$0xff]
  %v815 = vld [vmem:[%s8 + $0x70] sm:$0xff]
  %v816 = vld [vmem:[%s8 + $0x78] sm:$0xff]
  %v817 = vld [vmem:[%s9] sm:$0x1]
  %v819 = vlaneseq
  %v820 = vshrl.u32 %v819, 7
  %v821 = vsub.s32 0, %v820
  %v822 = vrot.slane %v817, %v821
  %824 = vmatprep.subr.mxu0 0.0
  %825 = vmatpush1.msra.mxu0 %v801
  %826 = vmatprep.subr.mxu0 0.0
  %827 = vmatpush1.msra.mxu0 %v802
  %828 = vmatprep.subr.mxu0 0.0
  %829 = vmatpush1.msra.mxu0 %v803
  %830 = vmatprep.subr.mxu0 0.0
  %831 = vmatpush1.msra.mxu0 %v804
  %832 = vmatprep.subr.mxu0 0.0
  %833 = vmatpush1.msra.mxu0 %v805
  %834 = vmatprep.subr.mxu0 0.0
  %835 = vmatpush1.msra.mxu0 %v806
  %836 = vmatprep.subr.mxu0 0.0
  %837 = vmatpush1.msra.mxu0 %v807
  %838 = vmatprep.subr.mxu0 0.0
  %839 = vmatpush1.msra.mxu0 %v808
  %840 = vmatprep.subr.mxu0 0.0
  %841 = vmatpush1.msra.mxu0 %v809
  %842 = vmatprep.subr.mxu0 0.0
  %843 = vmatpush1.msra.mxu0 %v810
  %844 = vmatprep.subr.mxu0 0.0
  %845 = vmatpush1.msra.mxu0 %v811
  %846 = vmatprep.subr.mxu0 0.0
  %847 = vmatpush1.msra.mxu0 %v812
  %848 = vmatprep.subr.mxu0 0.0
  %849 = vmatpush1.msra.mxu0 %v813
  %850 = vmatprep.subr.mxu0 0.0
  %851 = vmatpush1.msra.mxu0 %v814
  %852 = vmatprep.subr.mxu0 0.0
  %853 = vmatpush1.msra.mxu0 %v815
  %854 = vmatprep.subr.mxu0 0.0
  %855 = vmatpush1.msra.mxu0 %v816
  %856 = vmatprep.subr.mxu0 0.0
  %857 = vmatpush1.msra.mxu0 0.0
  %858 = vmatprep.subr.mxu0 0.0
  %859 = vmatpush1.msra.mxu0 0.0
  %860 = vmatprep.subr.mxu0 0.0
  %861 = vmatpush1.msra.mxu0 0.0
  %862 = vmatprep.subr.mxu0 0.0
  %863 = vmatpush1.msra.mxu0 0.0
  %864 = vmatprep.subr.mxu0 0.0
  %865 = vmatpush1.msra.mxu0 0.0
  %866 = vmatprep.subr.mxu0 0.0
  %867 = vmatpush1.msra.mxu0 0.0
  %868 = vmatprep.subr.mxu0 0.0
  %869 = vmatpush1.msra.mxu0 0.0
  %870 = vmatprep.subr.mxu0 0.0
  %871 = vmatpush1.msra.mxu0 0.0
  %872 = vmatprep.subr.mxu0 0.0
  %873 = vmatpush1.msra.mxu0 0.0
  %874 = vmatprep.subr.mxu0 0.0
  %875 = vmatpush1.msra.mxu0 0.0
  %876 = vmatprep.subr.mxu0 0.0
  %877 = vmatpush1.msra.mxu0 0.0
  %878 = vmatprep.subr.mxu0 0.0
  %879 = vmatpush1.msra.mxu0 0.0
  %880 = vmatprep.subr.mxu0 0.0
  %881 = vmatpush1.msra.mxu0 0.0
  %882 = vmatprep.subr.mxu0 0.0
  %883 = vmatpush1.msra.mxu0 0.0
  %884 = vmatprep.subr.mxu0 0.0
  %885 = vmatpush1.msra.mxu0 0.0
  %886 = vmatprep.subr.mxu0 0.0
  %887 = vmatpush1.msra.mxu0 0.0
  %888 = vmatprep.mubr.f32.mxu0 0.0
  %889 = vmatmul.mubr.f32.gmra.mrb[0].mxu0 %v797
  %v890 = vpop.f32.mrb[0].mxu0
  %v891 = vadd.f32 %v822, %v890
  %v892 = vpop.f32.mrb[0].mxu0
  %893 = vmatprep.mubr.f32.mxu0 0.0
  %894 = vmatmul.mubr.f32.gmra.mrb[0].mxu0 %v798
  %v895 = vpop.f32.mrb[0].mxu0
  %v896 = vadd.f32 %v822, %v895
  %v897 = vpop.f32.mrb[0].mxu0
  %898 = vmatprep.mubr.f32.mxu0 0.0
  %899 = vmatmul.mubr.f32.gmra.mrb[0].mxu0 %v799
  %v900 = vpop.f32.mrb[0].mxu0
  %v901 = vadd.f32 %v822, %v900
  %v902 = vpop.f32.mrb[0].mxu0
  %903 = vmatprep.mubr.f32.mxu0 0.0
  %904 = vmatmul.mubr.f32.gmra.mrb[0].mxu0 %v800
  %v905 = vpop.f32.mrb[0].mxu0
  %v906 = vadd.f32 %v822, %v905
  %v907 = vpop.f32.mrb[0].mxu0
  %908 = vdwg.mxu0
  %v909 = vrot.slane %v891, 7
  %v910 = vrot.slane %v896, 7
  %v911 = vrot.slane %v901, 7
  %v912 = vrot.slane %v906, 7
  %v913 = vsel %vm245, %v911, %v912
  %v914 = vsel %vm245, %v910, %v911
  %v915 = vsel %vm245, %v909, %v910
  %v916 = vsel %vm245, %v912, %v909
  %v917 = vsel %vm254, %v916, 0.0
  %v918 = vsel %vm255, %v915, 0.0
  %v919 = vsel %vm256, %v914, 0.0
  %v920 = vsel %vm257, %v913, 0.0
  %v921 = vrot.slane %v891, 1
  %v922 = vrot.slane %v896, 1
  %v923 = vrot.slane %v901, 1
  %v924 = vrot.slane %v906, 1
  %v925 = vsel %vm266, %v923, %v924
  %v926 = vsel %vm266, %v922, %v923
  %v927 = vsel %vm266, %v921, %v922
  %v928 = vsel %vm266, %v924, %v921
  %v929 = vsel %vm275, %v927, 0.0
  %v930 = vsel %vm276, %v926, 0.0
  %v931 = vsel %vm277, %v925, 0.0
  %v932 = vsel %vm278, %v928, 0.0
  %v933 = vld [vmem:[%s10] sm:$0xff]
  %v934 = vld [vmem:[%s10 + $0x8] sm:$0xff]
  %v935 = vld [vmem:[%s10 + $0x10] sm:$0xff]
  %v936 = vld [vmem:[%s10 + $0x18] sm:$0xff]
  %v937 = vld [vmem:[%s10 + $0x20] sm:$0xff]
  %v938 = vld [vmem:[%s10 + $0x28] sm:$0xff]
  %v939 = vld [vmem:[%s10 + $0x30] sm:$0xff]
  %v940 = vld [vmem:[%s10 + $0x38] sm:$0xff]
  %v941 = vld [vmem:[%s10 + $0x40] sm:$0xff]
  %v942 = vld [vmem:[%s10 + $0x48] sm:$0xff]
  %v943 = vld [vmem:[%s10 + $0x50] sm:$0xff]
  %v944 = vld [vmem:[%s10 + $0x58] sm:$0xff]
  %v945 = vld [vmem:[%s10 + $0x60] sm:$0xff]
  %v946 = vld [vmem:[%s10 + $0x68] sm:$0xff]
  %v947 = vld [vmem:[%s10 + $0x70] sm:$0xff]
  %v948 = vld [vmem:[%s10 + $0x78] sm:$0xff]
  %s949 = scalar_lea.vmem %s10, 128
  %v950 = vld [vmem:[%s949] sm:$0xff]
  %v951 = vld [vmem:[%s949 + $0x8] sm:$0xff]
  %v952 = vld [vmem:[%s949 + $0x10] sm:$0xff]
  %v953 = vld [vmem:[%s949 + $0x18] sm:$0xff]
  %v954 = vld [vmem:[%s949 + $0x20] sm:$0xff]
  %v955 = vld [vmem:[%s949 + $0x28] sm:$0xff]
  %v956 = vld [vmem:[%s949 + $0x30] sm:$0xff]
  %v957 = vld [vmem:[%s949 + $0x38] sm:$0xff]
  %v958 = vld [vmem:[%s949 + $0x40] sm:$0xff]
  %v959 = vld [vmem:[%s949 + $0x48] sm:$0xff]
  %v960 = vld [vmem:[%s949 + $0x50] sm:$0xff]
  %v961 = vld [vmem:[%s949 + $0x58] sm:$0xff]
  %v962 = vld [vmem:[%s949 + $0x60] sm:$0xff]
  %v963 = vld [vmem:[%s949 + $0x68] sm:$0xff]
  %v964 = vld [vmem:[%s949 + $0x70] sm:$0xff]
  %v965 = vld [vmem:[%s949 + $0x78] sm:$0xff]
  %966 = vmatprep.subr.mxu0 0.0
  %967 = vmatpush1.msra.mxu0 %v950
  %968 = vmatprep.subr.mxu0 0.0
  %969 = vmatpush1.msra.mxu0 %v951
  %970 = vmatprep.subr.mxu0 0.0
  %971 = vmatpush1.msra.mxu0 %v952
  %972 = vmatprep.subr.mxu0 0.0
  %973 = vmatpush1.msra.mxu0 %v953
  %974 = vmatprep.subr.mxu0 0.0
  %975 = vmatpush1.msra.mxu0 %v954
  %976 = vmatprep.subr.mxu0 0.0
  %977 = vmatpush1.msra.mxu0 %v955
  %978 = vmatprep.subr.mxu0 0.0
  %979 = vmatpush1.msra.mxu0 %v956
  %980 = vmatprep.subr.mxu0 0.0
  %981 = vmatpush1.msra.mxu0 %v957
  %982 = vmatprep.subr.mxu0 0.0
  %983 = vmatpush1.msra.mxu0 %v958
  %984 = vmatprep.subr.mxu0 0.0
  %985 = vmatpush1.msra.mxu0 %v959
  %986 = vmatprep.subr.mxu0 0.0
  %987 = vmatpush1.msra.mxu0 %v960
  %988 = vmatprep.subr.mxu0 0.0
  %989 = vmatpush1.msra.mxu0 %v961
  %990 = vmatprep.subr.mxu0 0.0
  %991 = vmatpush1.msra.mxu0 %v962
  %992 = vmatprep.subr.mxu0 0.0
  %993 = vmatpush1.msra.mxu0 %v963
  %994 = vmatprep.subr.mxu0 0.0
  %995 = vmatpush1.msra.mxu0 %v964
  %996 = vmatprep.subr.mxu0 0.0
  %997 = vmatpush1.msra.mxu0 %v965
  %998 = vmatprep.subr.mxu0 0.0
  %999 = vmatpush1.msra.mxu0 0.0
  %1000 = vmatprep.subr.mxu0 0.0
  %1001 = vmatpush1.msra.mxu0 0.0
  %1002 = vmatprep.subr.mxu0 0.0
  %1003 = vmatpush1.msra.mxu0 0.0
  %1004 = vmatprep.subr.mxu0 0.0
  %1005 = vmatpush1.msra.mxu0 0.0
  %1006 = vmatprep.subr.mxu0 0.0
  %1007 = vmatpush1.msra.mxu0 0.0
  %1008 = vmatprep.subr.mxu0 0.0
  %1009 = vmatpush1.msra.mxu0 0.0
  %1010 = vmatprep.subr.mxu0 0.0
  %1011 = vmatpush1.msra.mxu0 0.0
  %1012 = vmatprep.subr.mxu0 0.0
  %1013 = vmatpush1.msra.mxu0 0.0
  %1014 = vmatprep.subr.mxu0 0.0
  %1015 = vmatpush1.msra.mxu0 0.0
  %1016 = vmatprep.subr.mxu0 0.0
  %1017 = vmatpush1.msra.mxu0 0.0
  %1018 = vmatprep.subr.mxu0 0.0
  %1019 = vmatpush1.msra.mxu0 0.0
  %1020 = vmatprep.subr.mxu0 0.0
  %1021 = vmatpush1.msra.mxu0 0.0
  %1022 = vmatprep.subr.mxu0 0.0
  %1023 = vmatpush1.msra.mxu0 0.0
  %1024 = vmatprep.subr.mxu0 0.0
  %1025 = vmatpush1.msra.mxu0 0.0
  %1026 = vmatprep.subr.mxu0 0.0
  %1027 = vmatpush1.msra.mxu0 0.0
  %1028 = vmatprep.subr.mxu0 0.0
  %1029 = vmatpush1.msra.mxu0 0.0
  %1030 = vmatprep.mubr.f32.mxu0 0.0
  %1031 = vmatmul.mubr.f32.gmra.mrb[0].mxu0 %v891
  %v1032 = vpop.f32.mrb[0].mxu0
  %v1033 = vadd.f32 0.0, %v1032
  %v1034 = vpop.f32.mrb[0].mxu0
  %1035 = vmatprep.mubr.f32.mxu0 0.0
  %1036 = vmatmul.mubr.f32.gmra.mrb[0].mxu0 %v896
  %v1037 = vpop.f32.mrb[0].mxu0
  %v1038 = vadd.f32 0.0, %v1037
  %v1039 = vpop.f32.mrb[0].mxu0
  %1040 = vmatprep.mubr.f32.mxu0 0.0
  %1041 = vmatmul.mubr.f32.gmra.mrb[0].mxu0 %v901
  %v1042 = vpop.f32.mrb[0].mxu0
  %v1043 = vadd.f32 0.0, %v1042
  %v1044 = vpop.f32.mrb[0].mxu0
  %1045 = vmatprep.mubr.f32.mxu0 0.0
  %1046 = vmatmul.mubr.f32.gmra.mrb[0].mxu0 %v906
  %v1047 = vpop.f32.mrb[0].mxu0
  %v1048 = vadd.f32 0.0, %v1047
  %v1049 = vpop.f32.mrb[0].mxu0
  %1050 = vdwg.mxu0
  %1051 = vmatprep.subr.mxu0 0.0
  %1052 = vmatpush1.msra.mxu0 %v933
  %1053 = vmatprep.subr.mxu0 0.0
  %1054 = vmatpush1.msra.mxu0 %v934
  %1055 = vmatprep.subr.mxu0 0.0
  %1056 = vmatpush1.msra.mxu0 %v935
  %1057 = vmatprep.subr.mxu0 0.0
  %1058 = vmatpush1.msra.mxu0 %v936
  %1059 = vmatprep.subr.mxu0 0.0
  %1060 = vmatpush1.msra.mxu0 %v937
  %1061 = vmatprep.subr.mxu0 0.0
  %1062 = vmatpush1.msra.mxu0 %v938
  %1063 = vmatprep.subr.mxu0 0.0
  %1064 = vmatpush1.msra.mxu0 %v939
  %1065 = vmatprep.subr.mxu0 0.0
  %1066 = vmatpush1.msra.mxu0 %v940
  %1067 = vmatprep.subr.mxu0 0.0
  %1068 = vmatpush1.msra.mxu0 %v941
  %1069 = vmatprep.subr.mxu0 0.0
  %1070 = vmatpush1.msra.mxu0 %v942
  %1071 = vmatprep.subr.mxu0 0.0
  %1072 = vmatpush1.msra.mxu0 %v943
  %1073 = vmatprep.subr.mxu0 0.0
  %1074 = vmatpush1.msra.mxu0 %v944
  %1075 = vmatprep.subr.mxu0 0.0
  %1076 = vmatpush1.msra.mxu0 %v945
  %1077 = vmatprep.subr.mxu0 0.0
  %1078 = vmatpush1.msra.mxu0 %v946
  %1079 = vmatprep.subr.mxu0 0.0
  %1080 = vmatpush1.msra.mxu0 %v947
  %1081 = vmatprep.subr.mxu0 0.0
  %1082 = vmatpush1.msra.mxu0 %v948
  %1083 = vmatprep.subr.mxu0 0.0
  %1084 = vmatpush1.msra.mxu0 0.0
  %1085 = vmatprep.subr.mxu0 0.0
  %1086 = vmatpush1.msra.mxu0 0.0
  %1087 = vmatprep.subr.mxu0 0.0
  %1088 = vmatpush1.msra.mxu0 0.0
  %1089 = vmatprep.subr.mxu0 0.0
  %1090 = vmatpush1.msra.mxu0 0.0
  %1091 = vmatprep.subr.mxu0 0.0
  %1092 = vmatpush1.msra.mxu0 0.0
  %1093 = vmatprep.subr.mxu0 0.0
  %1094 = vmatpush1.msra.mxu0 0.0
  %1095 = vmatprep.subr.mxu0 0.0
  %1096 = vmatpush1.msra.mxu0 0.0
  %1097 = vmatprep.subr.mxu0 0.0
  %1098 = vmatpush1.msra.mxu0 0.0
  %1099 = vmatprep.subr.mxu0 0.0
  %1100 = vmatpush1.msra.mxu0 0.0
  %1101 = vmatprep.subr.mxu0 0.0
  %1102 = vmatpush1.msra.mxu0 0.0
  %1103 = vmatprep.subr.mxu0 0.0
  %1104 = vmatpush1.msra.mxu0 0.0
  %1105 = vmatprep.subr.mxu0 0.0
  %1106 = vmatpush1.msra.mxu0 0.0
  %1107 = vmatprep.subr.mxu0 0.0
  %1108 = vmatpush1.msra.mxu0 0.0
  %1109 = vmatprep.subr.mxu0 0.0
  %1110 = vmatpush1.msra.mxu0 0.0
  %1111 = vmatprep.subr.mxu0 0.0
  %1112 = vmatpush1.msra.mxu0 0.0
  %1113 = vmatprep.subr.mxu0 0.0
  %1114 = vmatpush1.msra.mxu0 0.0
  %1115 = vmatprep.mubr.f32.mxu0 0.0
  %1116 = vmatmul.mubr.f32.gmra.mrb[0].mxu0 %v917
  %v1117 = vpop.f32.mrb[0].mxu0
  %v1118 = vadd.f32 %v1033, %v1117
  %v1119 = vpop.f32.mrb[0].mxu0
  %1120 = vmatprep.mubr.f32.mxu0 0.0
  %1121 = vmatmul.mubr.f32.gmra.mrb[0].mxu0 %v918
  %v1122 = vpop.f32.mrb[0].mxu0
  %v1123 = vadd.f32 %v1038, %v1122
  %v1124 = vpop.f32.mrb[0].mxu0
  %1125 = vmatprep.mubr.f32.mxu0 0.0
  %1126 = vmatmul.mubr.f32.gmra.mrb[0].mxu0 %v919
  %v1127 = vpop.f32.mrb[0].mxu0
  %v1128 = vadd.f32 %v1043, %v1127
  %v1129 = vpop.f32.mrb[0].mxu0
  %1130 = vmatprep.mubr.f32.mxu0 0.0
  %1131 = vmatmul.mubr.f32.gmra.mrb[0].mxu0 %v920
  %v1132 = vpop.f32.mrb[0].mxu0
  %v1133 = vadd.f32 %v1048, %v1132
  %v1134 = vpop.f32.mrb[0].mxu0
  %1135 = vdwg.mxu0
  %s1136 = scalar_lea.vmem %s10, 256
  %v1137 = vld [vmem:[%s1136] sm:$0xff]
  %v1138 = vld [vmem:[%s1136 + $0x8] sm:$0xff]
  %v1139 = vld [vmem:[%s1136 + $0x10] sm:$0xff]
  %v1140 = vld [vmem:[%s1136 + $0x18] sm:$0xff]
  %v1141 = vld [vmem:[%s1136 + $0x20] sm:$0xff]
  %v1142 = vld [vmem:[%s1136 + $0x28] sm:$0xff]
  %v1143 = vld [vmem:[%s1136 + $0x30] sm:$0xff]
  %v1144 = vld [vmem:[%s1136 + $0x38] sm:$0xff]
  %v1145 = vld [vmem:[%s1136 + $0x40] sm:$0xff]
  %v1146 = vld [vmem:[%s1136 + $0x48] sm:$0xff]
  %v1147 = vld [vmem:[%s1136 + $0x50] sm:$0xff]
  %v1148 = vld [vmem:[%s1136 + $0x58] sm:$0xff]
  %v1149 = vld [vmem:[%s1136 + $0x60] sm:$0xff]
  %v1150 = vld [vmem:[%s1136 + $0x68] sm:$0xff]
  %v1151 = vld [vmem:[%s1136 + $0x70] sm:$0xff]
  %v1152 = vld [vmem:[%s1136 + $0x78] sm:$0xff]
  %1153 = vmatprep.subr.mxu0 0.0
  %1154 = vmatpush1.msra.mxu0 %v1137
  %1155 = vmatprep.subr.mxu0 0.0
  %1156 = vmatpush1.msra.mxu0 %v1138
  %1157 = vmatprep.subr.mxu0 0.0
  %1158 = vmatpush1.msra.mxu0 %v1139
  %1159 = vmatprep.subr.mxu0 0.0
  %1160 = vmatpush1.msra.mxu0 %v1140
  %1161 = vmatprep.subr.mxu0 0.0
  %1162 = vmatpush1.msra.mxu0 %v1141
  %1163 = vmatprep.subr.mxu0 0.0
  %1164 = vmatpush1.msra.mxu0 %v1142
  %1165 = vmatprep.subr.mxu0 0.0
  %1166 = vmatpush1.msra.mxu0 %v1143
  %1167 = vmatprep.subr.mxu0 0.0
  %1168 = vmatpush1.msra.mxu0 %v1144
  %1169 = vmatprep.subr.mxu0 0.0
  %1170 = vmatpush1.msra.mxu0 %v1145
  %1171 = vmatprep.subr.mxu0 0.0
  %1172 = vmatpush1.msra.mxu0 %v1146
  %1173 = vmatprep.subr.mxu0 0.0
  %1174 = vmatpush1.msra.mxu0 %v1147
  %1175 = vmatprep.subr.mxu0 0.0
  %1176 = vmatpush1.msra.mxu0 %v1148
  %1177 = vmatprep.subr.mxu0 0.0
  %1178 = vmatpush1.msra.mxu0 %v1149
  %1179 = vmatprep.subr.mxu0 0.0
  %1180 = vmatpush1.msra.mxu0 %v1150
  %1181 = vmatprep.subr.mxu0 0.0
  %1182 = vmatpush1.msra.mxu0 %v1151
  %1183 = vmatprep.subr.mxu0 0.0
  %1184 = vmatpush1.msra.mxu0 %v1152
  %1185 = vmatprep.subr.mxu0 0.0
  %1186 = vmatpush1.msra.mxu0 0.0
  %1187 = vmatprep.subr.mxu0 0.0
  %1188 = vmatpush1.msra.mxu0 0.0
  %1189 = vmatprep.subr.mxu0 0.0
  %1190 = vmatpush1.msra.mxu0 0.0
  %1191 = vmatprep.subr.mxu0 0.0
  %1192 = vmatpush1.msra.mxu0 0.0
  %1193 = vmatprep.subr.mxu0 0.0
  %1194 = vmatpush1.msra.mxu0 0.0
  %1195 = vmatprep.subr.mxu0 0.0
  %1196 = vmatpush1.msra.mxu0 0.0
  %1197 = vmatprep.subr.mxu0 0.0
  %1198 = vmatpush1.msra.mxu0 0.0
  %1199 = vmatprep.subr.mxu0 0.0
  %1200 = vmatpush1.msra.mxu0 0.0
  %1201 = vmatprep.subr.mxu0 0.0
  %1202 = vmatpush1.msra.mxu0 0.0
  %1203 = vmatprep.subr.mxu0 0.0
  %1204 = vmatpush1.msra.mxu0 0.0
  %1205 = vmatprep.subr.mxu0 0.0
  %1206 = vmatpush1.msra.mxu0 0.0
  %1207 = vmatprep.subr.mxu0 0.0
  %1208 = vmatpush1.msra.mxu0 0.0
  %1209 = vmatprep.subr.mxu0 0.0
  %1210 = vmatpush1.msra.mxu0 0.0
  %1211 = vmatprep.subr.mxu0 0.0
  %1212 = vmatpush1.msra.mxu0 0.0
  %1213 = vmatprep.subr.mxu0 0.0
  %1214 = vmatpush1.msra.mxu0 0.0
  %1215 = vmatprep.subr.mxu0 0.0
  %1216 = vmatpush1.msra.mxu0 0.0
  %1217 = vmatprep.mubr.f32.mxu0 0.0
  %1218 = vmatmul.mubr.f32.gmra.mrb[0].mxu0 %v929
  %v1219 = vpop.f32.mrb[0].mxu0
  %v1220 = vadd.f32 0.0, %v1219
  %v1221 = vpop.f32.mrb[0].mxu0
  %1222 = vmatprep.mubr.f32.mxu0 0.0
  %1223 = vmatmul.mubr.f32.gmra.mrb[0].mxu0 %v930
  %v1224 = vpop.f32.mrb[0].mxu0
  %v1225 = vadd.f32 0.0, %v1224
  %v1226 = vpop.f32.mrb[0].mxu0
  %1227 = vmatprep.mubr.f32.mxu0 0.0
  %1228 = vmatmul.mubr.f32.gmra.mrb[0].mxu0 %v931
  %v1229 = vpop.f32.mrb[0].mxu0
  %v1230 = vadd.f32 0.0, %v1229
  %v1231 = vpop.f32.mrb[0].mxu0
  %1232 = vmatprep.mubr.f32.mxu0 0.0
  %1233 = vmatmul.mubr.f32.gmra.mrb[0].mxu0 %v932
  %v1234 = vpop.f32.mrb[0].mxu0
  %v1235 = vadd.f32 0.0, %v1234
  %v1236 = vpop.f32.mrb[0].mxu0
  %1237 = vdwg.mxu0
  %v1238 = vadd.f32 %v1118, %v1220
  %v1239 = vadd.f32 %v1123, %v1225
  %v1240 = vadd.f32 %v1128, %v1230
  %v1241 = vadd.f32 %v1133, %v1235
  %v1242 = vld [vmem:[%s11] sm:$0x1]
  %v1244 = vlaneseq
  %v1245 = vshrl.u32 %v1244, 7
  %v1246 = vsub.s32 0, %v1245
  %v1247 = vrot.slane %v1242, %v1246
  %v1249 = vadd.f32 %v1238, %v1247
  %v1250 = vadd.f32 %v1239, %v1247
  %v1251 = vadd.f32 %v1240, %v1247
  %v1252 = vadd.f32 %v1241, %v1247
  %v1253 = vmax.f32 %v1249, 0.0
  %v1254 = vmax.f32 %v1250, 0.0
  %v1255 = vmax.f32 %v1251, 0.0
  %v1256 = vmax.f32 %v1252, 0.0
  %v1257 = vadd.f32 %v1253, %v1254
  %v1258 = vadd.f32 %v1257, %v1255
  %v1259 = vadd.f32 %v1258, %v1256
  %v1260 = vrot.slane %v1259, 4
  %v1261 = vadd.f32 %v1259, %v1260
  %v1262 = vrot.slane %v1261, 2
  %v1263 = vadd.f32 %v1261, %v1262
  %v1264 = vrot.slane %v1263, 1
  %v1265 = vadd.f32 %v1263, %v1264
  %v1266 = vmul.f32 %v1253, %v1253
  %v1267 = vmul.f32 %v1254, %v1254
  %v1268 = vmul.f32 %v1255, %v1255
  %v1269 = vmul.f32 %v1256, %v1256
  %v1270 = vadd.f32 %v1266, %v1267
  %v1271 = vadd.f32 %v1270, %v1268
  %v1272 = vadd.f32 %v1271, %v1269
  %v1273 = vrot.slane %v1272, 4
  %v1274 = vadd.f32 %v1272, %v1273
  %v1275 = vrot.slane %v1274, 2
  %v1276 = vadd.f32 %v1274, %v1275
  %v1277 = vrot.slane %v1276, 1
  %v1278 = vadd.f32 %v1276, %v1277
  %1279 = vmatprep.subr.mxu0 0.0
  %1280 = vmatpush1.msra.mxu0 %v47
  %1281 = vmatprep.subr.mxu0 0.0
  %1282 = vmatpush1.msra.mxu0 %v48
  %1283 = vmatprep.subr.mxu0 0.0
  %1284 = vmatpush1.msra.mxu0 %v49
  %1285 = vmatprep.subr.mxu0 0.0
  %1286 = vmatpush1.msra.mxu0 %v50
  %1287 = vmatprep.subr.mxu0 0.0
  %1288 = vmatpush1.msra.mxu0 %v51
  %1289 = vmatprep.subr.mxu0 0.0
  %1290 = vmatpush1.msra.mxu0 %v52
  %1291 = vmatprep.subr.mxu0 0.0
  %1292 = vmatpush1.msra.mxu0 %v53
  %1293 = vmatprep.subr.mxu0 0.0
  %1294 = vmatpush1.msra.mxu0 %v54
  %1295 = vmatprep.subr.mxu0 0.0
  %1296 = vmatpush1.msra.mxu0 %v55
  %1297 = vmatprep.subr.mxu0 0.0
  %1298 = vmatpush1.msra.mxu0 %v56
  %1299 = vmatprep.subr.mxu0 0.0
  %1300 = vmatpush1.msra.mxu0 %v57
  %1301 = vmatprep.subr.mxu0 0.0
  %1302 = vmatpush1.msra.mxu0 %v58
  %1303 = vmatprep.subr.mxu0 0.0
  %1304 = vmatpush1.msra.mxu0 %v59
  %1305 = vmatprep.subr.mxu0 0.0
  %1306 = vmatpush1.msra.mxu0 %v60
  %1307 = vmatprep.subr.mxu0 0.0
  %1308 = vmatpush1.msra.mxu0 %v61
  %1309 = vmatprep.subr.mxu0 0.0
  %1310 = vmatpush1.msra.mxu0 %v62
  %1311 = vmatprep.subr.mxu0 0.0
  %1312 = vmatpush1.msra.mxu0 0.0
  %1313 = vmatprep.subr.mxu0 0.0
  %1314 = vmatpush1.msra.mxu0 0.0
  %1315 = vmatprep.subr.mxu0 0.0
  %1316 = vmatpush1.msra.mxu0 0.0
  %1317 = vmatprep.subr.mxu0 0.0
  %1318 = vmatpush1.msra.mxu0 0.0
  %1319 = vmatprep.subr.mxu0 0.0
  %1320 = vmatpush1.msra.mxu0 0.0
  %1321 = vmatprep.subr.mxu0 0.0
  %1322 = vmatpush1.msra.mxu0 0.0
  %1323 = vmatprep.subr.mxu0 0.0
  %1324 = vmatpush1.msra.mxu0 0.0
  %1325 = vmatprep.subr.mxu0 0.0
  %1326 = vmatpush1.msra.mxu0 0.0
  %1327 = vmatprep.subr.mxu0 0.0
  %1328 = vmatpush1.msra.mxu0 0.0
  %1329 = vmatprep.subr.mxu0 0.0
  %1330 = vmatpush1.msra.mxu0 0.0
  %1331 = vmatprep.subr.mxu0 0.0
  %1332 = vmatpush1.msra.mxu0 0.0
  %1333 = vmatprep.subr.mxu0 0.0
  %1334 = vmatpush1.msra.mxu0 0.0
  %1335 = vmatprep.subr.mxu0 0.0
  %1336 = vmatpush1.msra.mxu0 0.0
  %1337 = vmatprep.subr.mxu0 0.0
  %1338 = vmatpush1.msra.mxu0 0.0
  %1339 = vmatprep.subr.mxu0 0.0
  %1340 = vmatpush1.msra.mxu0 0.0
  %1341 = vmatprep.subr.mxu0 0.0
  %1342 = vmatpush1.msra.mxu0 0.0
  %1343 = vmatprep.mubr.f32.mxu0 0.0
  %1344 = vmatmul.mubr.f32.gmra.mrb[0].mxu0 %v1265
  %v1345 = vpop.f32.mrb[0].mxu0
  %v1346 = vadd.f32 0.0, %v1345
  %v1347 = vpop.f32.mrb[0].mxu0
  %1348 = vdwg.mxu0
  %v1349 = vmul.f32 %v1346, 0.001953125
  %1350 = vmatprep.subr.mxu0 0.0
  %1351 = vmatpush1.msra.mxu0 %v47
  %1352 = vmatprep.subr.mxu0 0.0
  %1353 = vmatpush1.msra.mxu0 %v48
  %1354 = vmatprep.subr.mxu0 0.0
  %1355 = vmatpush1.msra.mxu0 %v49
  %1356 = vmatprep.subr.mxu0 0.0
  %1357 = vmatpush1.msra.mxu0 %v50
  %1358 = vmatprep.subr.mxu0 0.0
  %1359 = vmatpush1.msra.mxu0 %v51
  %1360 = vmatprep.subr.mxu0 0.0
  %1361 = vmatpush1.msra.mxu0 %v52
  %1362 = vmatprep.subr.mxu0 0.0
  %1363 = vmatpush1.msra.mxu0 %v53
  %1364 = vmatprep.subr.mxu0 0.0
  %1365 = vmatpush1.msra.mxu0 %v54
  %1366 = vmatprep.subr.mxu0 0.0
  %1367 = vmatpush1.msra.mxu0 %v55
  %1368 = vmatprep.subr.mxu0 0.0
  %1369 = vmatpush1.msra.mxu0 %v56
  %1370 = vmatprep.subr.mxu0 0.0
  %1371 = vmatpush1.msra.mxu0 %v57
  %1372 = vmatprep.subr.mxu0 0.0
  %1373 = vmatpush1.msra.mxu0 %v58
  %1374 = vmatprep.subr.mxu0 0.0
  %1375 = vmatpush1.msra.mxu0 %v59
  %1376 = vmatprep.subr.mxu0 0.0
  %1377 = vmatpush1.msra.mxu0 %v60
  %1378 = vmatprep.subr.mxu0 0.0
  %1379 = vmatpush1.msra.mxu0 %v61
  %1380 = vmatprep.subr.mxu0 0.0
  %1381 = vmatpush1.msra.mxu0 %v62
  %1382 = vmatprep.subr.mxu0 0.0
  %1383 = vmatpush1.msra.mxu0 0.0
  %1384 = vmatprep.subr.mxu0 0.0
  %1385 = vmatpush1.msra.mxu0 0.0
  %1386 = vmatprep.subr.mxu0 0.0
  %1387 = vmatpush1.msra.mxu0 0.0
  %1388 = vmatprep.subr.mxu0 0.0
  %1389 = vmatpush1.msra.mxu0 0.0
  %1390 = vmatprep.subr.mxu0 0.0
  %1391 = vmatpush1.msra.mxu0 0.0
  %1392 = vmatprep.subr.mxu0 0.0
  %1393 = vmatpush1.msra.mxu0 0.0
  %1394 = vmatprep.subr.mxu0 0.0
  %1395 = vmatpush1.msra.mxu0 0.0
  %1396 = vmatprep.subr.mxu0 0.0
  %1397 = vmatpush1.msra.mxu0 0.0
  %1398 = vmatprep.subr.mxu0 0.0
  %1399 = vmatpush1.msra.mxu0 0.0
  %1400 = vmatprep.subr.mxu0 0.0
  %1401 = vmatpush1.msra.mxu0 0.0
  %1402 = vmatprep.subr.mxu0 0.0
  %1403 = vmatpush1.msra.mxu0 0.0
  %1404 = vmatprep.subr.mxu0 0.0
  %1405 = vmatpush1.msra.mxu0 0.0
  %1406 = vmatprep.subr.mxu0 0.0
  %1407 = vmatpush1.msra.mxu0 0.0
  %1408 = vmatprep.subr.mxu0 0.0
  %1409 = vmatpush1.msra.mxu0 0.0
  %1410 = vmatprep.subr.mxu0 0.0
  %1411 = vmatpush1.msra.mxu0 0.0
  %1412 = vmatprep.subr.mxu0 0.0
  %1413 = vmatpush1.msra.mxu0 0.0
  %1414 = vmatprep.mubr.f32.mxu0 0.0
  %1415 = vmatmul.mubr.f32.gmra.mrb[0].mxu0 %v1278
  %v1416 = vpop.f32.mrb[0].mxu0
  %v1417 = vadd.f32 0.0, %v1416
  %v1418 = vpop.f32.mrb[0].mxu0
  %1419 = vdwg.mxu0
  %v1420 = vmul.f32 %v1417, 0.001953125
  %v1421 = vmul.f32 %v1349, %v1349
  %v1422 = vsub.f32 %v1420, %v1421
  %v1423 = vmax.f32 %v1422, 0.0
  %v1424 = vld [vmem:[%s12] sm:$0x1]
  %v1425 = vadd.f32 %v1423, 1e-05
  %v1426 = vrsqrt.pop %v1425
  %v1427 = vmul.f32 %v1424, %v1426
  %v1428 = vld [vmem:[%s13] sm:$0x1]
  %v1429 = vmul.f32 %v1349, %v1427
  %v1430 = vsub.f32 %v1428, %v1429
  %v1432 = vlaneseq
  %v1433 = vshrl.u32 %v1432, 7
  %v1434 = vsub.s32 0, %v1433
  %v1435 = vrot.slane %v1427, %v1434
  %v1437 = vmul.f32 %v1253, %v1435
  %v1438 = vmul.f32 %v1254, %v1435
  %v1439 = vmul.f32 %v1255, %v1435
  %v1440 = vmul.f32 %v1256, %v1435
  %v1442 = vlaneseq
  %v1443 = vshrl.u32 %v1442, 7
  %v1444 = vsub.s32 0, %v1443
  %v1445 = vrot.slane %v1430, %v1444
  %v1447 = vadd.f32 %v1437, %v1445
  %v1448 = vadd.f32 %v1438, %v1445
  %v1449 = vadd.f32 %v1439, %v1445
  %v1450 = vadd.f32 %v1440, %v1445
  %1451 = vst [vmem:[%s14] sm:$0xff] %v1447
  %1452 = vst [vmem:[%s14 + $0x8] sm:$0xff] %v1448
  %1453 = vst [vmem:[%s14 + $0x10] sm:$0xff] %v1449
  %1454 = vst [vmem:[%s14 + $0x18] sm:$0xff] %v1450
  // Predicated region
  $region58: #{separable_downsample_conv.1} parent=0 // pred_check
    _
  $region59: #{separable_downsample_conv.1} parent=0 // pred_check_branch
    %1456 = sbr.rel (0) target = $region61
  $region60: #{separable_downsample_conv.1} parent=0 // pred_region
    _
  $region61: #{separable_downsample_conv.1} parent=0 // pred_fallthru
    _
  // Predicated region
  $region62: #{separable_downsample_conv.1} parent=0 // pred_check
    _
  $region63: #{separable_downsample_conv.1} parent=0 // pred_check_branch
    %1458 = sbr.rel (0) target = $region65
  $region64: #{separable_downsample_conv.1} parent=0 // pred_region
    _
  $region65: #{separable_downsample_conv.1} parent=0 // pred_fallthru
    _

</llo_original>
